<compile_context>
chip_gen: v5e
topology: v5e:2x2
jax: 0.10.0
libtpu: 0.0.40
codegen_flags: <defaults>
</compile_context>

<pallas_src>
import jax
import jax.numpy as jnp
from jax.experimental import pallas as pl
from jax.experimental.pallas import tpu as pltpu


_PAD = 128  # lane-slot width each of K/Q/V is padded to inside the fused weight


def fuse_head_weights(wk, wq, wv):
    """One-time (init-path) weight fusion: [K | Q*C**-0.5 | V], each padded to
    a 128-lane slot, cast to bf16. Call OUTSIDE the per-step forward path."""
    C, H = wk.shape
    assert H <= _PAD
    scale = C ** (-0.5)  # v2.py scales by n_embd**-0.5 (not head_size**-0.5)
    w = jnp.zeros((C, 3 * _PAD), dtype=jnp.float32)
    w = w.at[:, 0 * _PAD:0 * _PAD + H].set(wk)
    w = w.at[:, 1 * _PAD:1 * _PAD + H].set(wq * scale)   # fold scale into Wq
    w = w.at[:, 2 * _PAD:2 * _PAD + H].set(wv)
    return w.astype(jnp.bfloat16)


def _head_kernel(x_ref, w_ref, o_ref, kqv_ref):
    # x_ref:   (T, C)        f32   (one batch row; cast to bf16 in-kernel)
    # w_ref:   (C, 3*_PAD)   bf16  (fused, scale-folded, zero-padded weights)
    # o_ref:   (T, H)        f32
    # kqv_ref: (T, 3*_PAD)   bf16  VMEM scratch (parked projection result)
    T, C = x_ref.shape
    H = o_ref.shape[-1]
    P = kqv_ref.shape[-1] // 3

    # Fused K|Q|V projection: one lane-dense MXU pass, f32 accumulation.
    # In-kernel bf16 cast of x (VPU) hides under the matmul.
    x_bf = x_ref[...].astype(jnp.bfloat16)
    kqv_ref[...] = jnp.dot(
        x_bf, w_ref[...], preferred_element_type=jnp.float32
    ).astype(jnp.bfloat16)                                   # park in VMEM

    # Tile-aligned (128-lane slot) views; q already carries the C**-0.5 scale.
    k = kqv_ref[:, 0 * P:1 * P]                              # (T, P) bf16
    q = kqv_ref[:, 1 * P:2 * P]                              # (T, P) bf16

    # wei = q @ k^T (contract padded dim; zero columns contribute nothing).
    wei = jax.lax.dot_general(q, k, (((1,), (1,)), ((), ())),
                              preferred_element_type=jnp.float32)   # (T, T)

    # Causal mask (tril in v2.py): every row keeps col 0, so -inf is NaN-safe.
    row = jax.lax.broadcasted_iota(jnp.int32, (T, T), 0)
    col = jax.lax.broadcasted_iota(jnp.int32, (T, T), 1)
    wei = jnp.where(col <= row, wei, -jnp.inf)

    # Softmax along last dim (f32 math; reciprocal on the EUP slot).
    m = jnp.max(wei, axis=-1, keepdims=True)
    e = jnp.exp(wei - m)
    p = e * pl.reciprocal(jnp.sum(e, axis=-1, keepdims=True), approx=True)

    # out = p @ v; v re-read from VMEM scratch only now (low register pressure).
    v = kqv_ref[:, 2 * P:3 * P]                              # (T, P) bf16
    out = jnp.dot(p.astype(jnp.bfloat16), v,
                  preferred_element_type=jnp.float32)        # (T, P) f32
    o_ref[...] = out[:, :H].astype(o_ref.dtype)              # offset-0 slice


@jax.jit
def head_forward(x, w_kqv):
    """x: (B, T, C) f32; w_kqv: (C, 3*128) bf16 from fuse_head_weights().
    Returns (B, T, H) f32 with H = head_size (64)."""
    B, T, C = x.shape
    H = 64  # head_size of this module configuration
    P = w_kqv.shape[1] // 3

    flops = 2 * B * (T * C * 3 * P + 2 * T * T * P)
    bytes_accessed = (B * T * C * 4          # x (f32, cast in-kernel)
                      + C * 3 * P * 2        # fused weights (bf16)
                      + B * T * H * 4)       # output (f32)
    cost = pl.CostEstimate(flops=flops,
                           transcendentals=B * T * T,   # exp in softmax
                           bytes_accessed=bytes_accessed)

    return pl.pallas_call(
        _head_kernel,
        out_shape=jax.ShapeDtypeStruct((B, T, H), x.dtype),
        grid_spec=pltpu.PrefetchScalarGridSpec(
            num_scalar_prefetch=0,
            grid=(B,),
            in_specs=[
                pl.BlockSpec((None, T, C), lambda b: (b, 0, 0)),     # x[b]
                pl.BlockSpec((C, 3 * P), lambda b: (0, 0)),          # fused W
            ],
            out_specs=pl.BlockSpec((None, T, H), lambda b: (b, 0, 0)),
            scratch_shapes=[pltpu.VMEM((T, 3 * P), jnp.bfloat16)],   # kqv park
        ),
        compiler_params=pltpu.CompilerParams(
            dimension_semantics=("parallel",),   # one batch per TC on v7x
        ),
        cost_estimate=cost,
    )(x, w_kqv)


def head_reference(x, wk, wq, wv):
    """Pure-JAX f32 reference (mirrors the PyTorch forward in eval mode)."""
    B, T, C = x.shape
    k = x @ wk
    q = x @ wq
    v = x @ wv
    wei = jnp.einsum("btj,bsj->bts", q, k) * (C ** -0.5)
    mask = jnp.tril(jnp.ones((T, T), dtype=bool))
    wei = jnp.where(mask[None, :, :], wei, -jnp.inf)
    wei = jax.nn.softmax(wei, axis=-1)
    return wei @ v


if __name__ == "__main__":
    # Small shapes consistent with the module (block_size=256 so T<=256,
    # n_embd=384, head_size=64 as in the 6-head configuration).
    B, T, C, H = 2, 128, 384, 64

    key = jax.random.PRNGKey(0)
    kx, kk, kq, kv = jax.random.split(key, 4)

    x = jax.random.normal(kx, (B, T, C), dtype=jnp.float32)
    # Deterministic init mimicking nn.Linear(n_embd, head_size, bias=False):
    # uniform(-1/sqrt(C), 1/sqrt(C)); stored as (C, H) i.e. W^T.
    bound = 1.0 / (C ** 0.5)
    wk = jax.random.uniform(kk, (C, H), jnp.float32, -bound, bound)
    wq = jax.random.uniform(kq, (C, H), jnp.float32, -bound, bound)
    wv = jax.random.uniform(kv, (C, H), jnp.float32, -bound, bound)

    # One-time weight fusion (init path, NOT per forward call).
    w_kqv = jax.block_until_ready(fuse_head_weights(wk, wq, wv))

    out = head_forward(x, w_kqv)
    out = jax.block_until_ready(out)

    ref = head_reference(x, wk, wq, wv)
    assert out.shape == (B, T, H), out.shape
    # bf16 matmuls with f32 accumulation + approx reciprocal -> loose tolerance.
    assert jnp.allclose(out, ref, atol=2e-2, rtol=2e-2), (
        float(jnp.max(jnp.abs(out - ref)))
    )

    print("KERNEL_OK")
</pallas_src>

<mosaic_0001>
module attributes {stable_mosaic.version = 11 : i64} {
  func.func @_head_kernel(%arg0: i32, %arg1: memref<1x128x384xf32, #tpu.memory_space<vmem>>, %arg2: memref<384x384xbf16, #tpu.memory_space<vmem>>, %arg3: memref<1x128x64xf32, #tpu.memory_space<vmem>>, %arg4: memref<128x384xbf16, #tpu.memory_space<vmem>>) attributes {dimension_semantics = [#tpu.dimension_semantics<parallel>], iteration_bounds = array<i64: 2>, scalar_prefetch = 0 : i64, scratch_operands = 1 : i64, tpu.core_type = #tpu.core_type<tc>, window_params = [{transform_indices = @transform_0, window_bounds = array<i64: 1, 128, 384>}, {pipeline_mode = #tpu.pipeline_mode<synchronous>, transform_indices = @transform_1, window_bounds = array<i64: 384, 384>}, {transform_indices = @transform_2, window_bounds = array<i64: 1, 128, 64>}]} {
    %c0 = arith.constant 0 : index
    %c0_0 = arith.constant 0 : index
    %c0_1 = arith.constant 0 : index
    %0 = vector.load %arg1[%c0, %c0_0, %c0_1] : memref<1x128x384xf32, #tpu.memory_space<vmem>>, vector<1x128x384xf32>
    %1 = vector.shape_cast %0 : vector<1x128x384xf32> to vector<128x384xf32>
    %2 = arith.truncf %1 : vector<128x384xf32> to vector<128x384xbf16>
    %c0_2 = arith.constant 0 : index
    %c0_3 = arith.constant 0 : index
    %3 = vector.load %arg2[%c0_2, %c0_3] : memref<384x384xbf16, #tpu.memory_space<vmem>>, vector<384x384xbf16>
    %cst = arith.constant dense<0.000000e+00> : vector<128x384xf32>
    %4 = tpu.matmul %2, %3, %cst {dimension_numbers = #tpu.dot_dimension_numbers<[1], [0], [0], [1], [0, 0, 1, 1], [], []>} : vector<128x384xbf16>, vector<384x384xbf16>, vector<128x384xf32> -> vector<128x384xf32>
    %5 = arith.truncf %4 : vector<128x384xf32> to vector<128x384xbf16>
    %c0_4 = arith.constant 0 : index
    %c0_5 = arith.constant 0 : index
    %6 = vector.load %arg4[%c0_4, %c0_5] : memref<128x384xbf16, #tpu.memory_space<vmem>>, vector<128x384xbf16>
    tpu.vector_store %arg4[%c0_4, %c0_5], %5 {strides = array<i32>} : memref<128x384xbf16, #tpu.memory_space<vmem>>, vector<128x384xbf16>,
    %c0_6 = arith.constant 0 : index
    %c0_7 = arith.constant 0 : index
    %7 = vector.load %arg4[%c0_6, %c0_7] : memref<128x384xbf16, #tpu.memory_space<vmem>>, vector<128x128xbf16>
    %c0_8 = arith.constant 0 : index
    %c128 = arith.constant 128 : index
    %8 = vector.load %arg4[%c0_8, %c128] : memref<128x384xbf16, #tpu.memory_space<vmem>>, vector<128x128xbf16>
    %cst_9 = arith.constant dense<0.000000e+00> : vector<128x128xf32>
    %9 = tpu.matmul %8, %7, %cst_9 {dimension_numbers = #tpu.dot_dimension_numbers<[1], [1], [0], [0], [0, 0, 1, 0], [], []>} : vector<128x128xbf16>, vector<128x128xbf16>, vector<128x128xf32> -> vector<128x128xf32>
    %10 = tpu.iota {dimensions = array<i32: 0>} : vector<128x128xi32>
    %11 = tpu.iota {dimensions = array<i32: 1>} : vector<128x128xi32>
    %12 = arith.cmpi sle, %11, %10 : vector<128x128xi32>
    %cst_10 = arith.constant 0xFF800000 : f32
    %13 = vector.broadcast %cst_10 : f32 to vector<128x128xf32>
    %14 = arith.select %12, %9, %13 : vector<128x128xi1>, vector<128x128xf32>
    %cst_11 = arith.constant dense<0xFF800000> : vector<128xf32>
    %15 = vector.multi_reduction <maximumf>, %14, %cst_11 [1] : vector<128x128xf32> to vector<128xf32>
    %16 = vector.shape_cast %15 : vector<128xf32> to vector<128x1xf32>
    %17 = vector.broadcast %16 : vector<128x1xf32> to vector<128x128xf32>
    %18 = arith.subf %14, %17 : vector<128x128xf32>
    %19 = math.exp %18 : vector<128x128xf32>
    %cst_12 = arith.constant dense<0.000000e+00> : vector<128xf32>
    %20 = vector.multi_reduction <add>, %19, %cst_12 [1] : vector<128x128xf32> to vector<128xf32>
    %21 = vector.shape_cast %20 : vector<128xf32> to vector<128x1xf32>
    %22 = tpu.reciprocal %21 {approx = true} : vector<128x1xf32> -> vector<128x1xf32>
    %23 = vector.broadcast %22 : vector<128x1xf32> to vector<128x128xf32>
    %24 = arith.mulf %19, %23 : vector<128x128xf32>
    %c0_13 = arith.constant 0 : index
    %c256 = arith.constant 256 : index
    %25 = vector.load %arg4[%c0_13, %c256] : memref<128x384xbf16, #tpu.memory_space<vmem>>, vector<128x128xbf16>
    %26 = arith.truncf %24 : vector<128x128xf32> to vector<128x128xbf16>
    %cst_14 = arith.constant dense<0.000000e+00> : vector<128x128xf32>
    %27 = tpu.matmul %26, %25, %cst_14 {dimension_numbers = #tpu.dot_dimension_numbers<[1], [0], [0], [1], [0, 0, 1, 1], [], []>} : vector<128x128xbf16>, vector<128x128xbf16>, vector<128x128xf32> -> vector<128x128xf32>
    %28 = vector.extract_strided_slice %27 {offsets = [0, 0], sizes = [128, 64], strides = [1, 1]} : vector<128x128xf32> to vector<128x64xf32>
    %c0_15 = arith.constant 0 : index
    %c0_16 = arith.constant 0 : index
    %c0_17 = arith.constant 0 : index
    %29 = vector.load %arg3[%c0_15, %c0_16, %c0_17] : memref<1x128x64xf32, #tpu.memory_space<vmem>>, vector<1x128x64xf32>
    %30 = vector.shape_cast %29 : vector<1x128x64xf32> to vector<128x64xf32>
    %31 = vector.shape_cast %28 : vector<128x64xf32> to vector<1x128x64xf32>
    tpu.vector_store %arg3[%c0_15, %c0_16, %c0_17], %31 {strides = array<i32>} : memref<1x128x64xf32, #tpu.memory_space<vmem>>, vector<1x128x64xf32>,
    return
  }
  func.func @transform_0(%arg0: i32) -> (i32, i32, i32) {
    %c0_i32 = arith.constant 0 : i32
    %c0_i32_0 = arith.constant 0 : i32
    %c0_i32_1 = arith.constant 0 : i32
    return %arg0, %c0_i32, %c0_i32_0 : i32, i32, i32
  }
  func.func @transform_1(%arg0: i32) -> (i32, i32) {
    %c0_i32 = arith.constant 0 : i32
    %c0_i32_0 = arith.constant 0 : i32
    %c0_i32_1 = arith.constant 0 : i32
    return %c0_i32, %c0_i32_0 : i32, i32
  }
  func.func @transform_2(%arg0: i32) -> (i32, i32, i32) {
    %c0_i32 = arith.constant 0 : i32
    %c0_i32_0 = arith.constant 0 : i32
    %c0_i32_1 = arith.constant 0 : i32
    return %arg0, %c0_i32, %c0_i32_0 : i32, i32, i32
  }
}

</mosaic_0001>

<llo_original>
// kernel: head_forward.1
$region0: #{head_forward.1}
  #allocation0 [shape = 'u32[]', space=smem, size = 0x4, offset = 0x4, fixed_abs, tag = 'smem constant byte address 0x4 - core index']
  #allocation1 [shape = 'u32[72,128]{1,0:T(1,128)}', space=vmem, size = 0x9000, scoped, tag = 'internal scratch']
  #allocation2 [shape = 'bf16[128,384]{1,0:T(8,128)(2,1)}', space=vmem, size = 0x18000, scoped, tag = 'scratch operand']
  %s0 = inlined_call_operand.hbm [shape: f32[2,128,384], index: 0, kind: input, shape index: {}]
  %s1 = inlined_call_operand.hbm [shape: bf16[384,384], index: 1, kind: input, shape index: {}]
  %s2 = inlined_call_operand.vmem [shape: f32[2,128,64], index: 2, kind: output, shape index: {}]
  %s3 = sld [smem:[#allocation0]]
  $region49: #{head_forward.1} parent=0
    _
  %s5 = ssub.s32 1, %s3
  %s6 = scalar_select 0, %s5, %s3
  $region1: #{head_forward.1} parent=0
    #allocation3 [shape = 'u8[393216]{0}', space=vmem, size = 0x60000, scoped, tag = 'input window, operand 0']
    #allocation4 [shape = 's32[2]{0}', space=sflag, size = 0x8, scoped, tag = 'scoped memory for head_forward.1']
    #allocation5 [shape = 'u8[294912]{0}', space=vmem, size = 0x48000, scoped, tag = 'input window, operand 1, single buffered']
    #allocation6 [shape = 's32[1]{0}', space=sflag, size = 0x4, scoped, tag = 'scoped memory for head_forward.1']
    %7 = vsyncpa [#allocation4], 0
    %s8 = scalar_lea.sflag [#allocation4], 1
    %9 = vsyncpa %s8, 0
    %10 = vsyncpa [#allocation6], 0
    loop: start=0, step=1, limit=4
    $region2: #{head_forward.1} parent=1 // loop_pre_header
      _
    $region3: #{head_forward.1} parent=1 // loop_header
      %s12 = sphi 0, %s16
      %p13 = scmp.ge.s32.totalorder %s12, 4
      %s22 = sphi 0, %s24
      %s25 = sphi 0, %s22
      %s26 = sphi 0, %s25
      %s42 = sphi 0, %s26
      %s46 = sphi 0, %s46
      %s48 = sphi 0, %s46
      %s49 = sphi 0, %s48
      %s63 = sphi 0, %s49
      %s69 = sphi 0, %s71
      %s72 = sphi 0, %s69
      %s73 = sphi 0, %s72
      %s89 = sphi 0, %s73
    $region4: #{head_forward.1} parent=1 // loop_header_branch
      %15 = sbr.rel (%p13) target = $region8
    $region5: #{head_forward.1} parent=1 // loop_body
      %s17 = ssub.s32 %s12, 1
      %s18 = ssub.s32 %s12, 2
      %s19 = sadd.s32 %s12, 1
      %s20 = ssub.s32 %s12, %s19
      %p21 = scmp.eq.s32.totalorder %s20, 0
      %s23 = sadd.s32 %s22, 1
      %s24 = scalar_select %p21, %s22, %s23
      %p27 = pneg %p21
      %p28 = scmp.eq.s32.totalorder %s12, 1
      %p29 = por %p27, %p28
      %p30 = scmp.ne.s32.totalorder %s22, %s25
      %p31 = scmp.eq.s32.totalorder %s12, 0
      %p32 = por %p30, %p31
      %p33 = scmp.ne.s32.totalorder %s22, %s25
      %p34 = scmp.eq.s32.totalorder %s17, 1
      %p35 = por %p33, %p34
      %p36 = scmp.ne.s32.totalorder %s25, %s26
      %p37 = scmp.eq.s32.totalorder %s17, 0
      %p38 = por %p36, %p37
      %p39 = scmp.ne.s32.totalorder %s25, %s26
      %p40 = scmp.eq.s32.totalorder %s18, 1
      %p41 = por %p39, %p40
      %p43 = scmp.ne.s32.totalorder %s26, %s42
      %p44 = scmp.eq.s32.totalorder %s18, 0
      %p45 = por %p43, %p44
      %s47 = sadd.s32 %s46, 1
      %p50 = scmp.eq.s32.totalorder %s12, 1
      %p51 = scmp.ne.s32.totalorder %s46, %s48
      %p52 = scmp.eq.s32.totalorder %s12, 0
      %p53 = por %p51, %p52
      %p54 = scmp.ne.s32.totalorder %s46, %s48
      %p55 = scmp.eq.s32.totalorder %s17, 1
      %p56 = por %p54, %p55
      %p57 = scmp.ne.s32.totalorder %s48, %s49
      %p58 = scmp.eq.s32.totalorder %s17, 0
      %p59 = por %p57, %p58
      %p60 = scmp.ne.s32.totalorder %s48, %s49
      %p61 = scmp.eq.s32.totalorder %s18, 1
      %p62 = por %p60, %p61
      %p64 = scmp.ne.s32.totalorder %s49, %s63
      %p65 = scmp.eq.s32.totalorder %s18, 0
      %p66 = por %p64, %p65
      %s67 = ssub.s32 %s12, %s19
      %p68 = scmp.eq.s32.totalorder %s67, 0
      %s70 = sadd.s32 %s69, 1
      %s71 = scalar_select %p68, %s69, %s70
      %p74 = pneg %p68
      %p75 = scmp.eq.s32.totalorder %s12, 1
      %p76 = por %p74, %p75
      %p77 = scmp.ne.s32.totalorder %s69, %s72
      %p78 = scmp.eq.s32.totalorder %s12, 0
      %p79 = por %p77, %p78
      %p80 = scmp.ne.s32.totalorder %s69, %s72
      %p81 = scmp.eq.s32.totalorder %s17, 1
      %p82 = por %p80, %p81
      %p83 = scmp.ne.s32.totalorder %s72, %s73
      %p84 = scmp.eq.s32.totalorder %s17, 0
      %p85 = por %p83, %p84
      %p86 = scmp.ne.s32.totalorder %s72, %s73
      %p87 = scmp.eq.s32.totalorder %s18, 1
      %p88 = por %p86, %p87
      %p90 = scmp.ne.s32.totalorder %s73, %s89
      %p91 = scmp.eq.s32.totalorder %s18, 0
      %p92 = por %p90, %p91
      %p93 = scmp.le.s32.totalorder 1, %s12
      %p94 = scmp.lt.s32.totalorder %s12, 3
      %p95 = pnand %p93, %p94
      %p96 = pneg %p95
      // Predicated region
      $region9: #{head_forward.1} parent=5 // pred_check
        _
      $region10: #{head_forward.1} parent=5 // pred_check_branch
        %98 = sbr.rel (%p95) target = $region12
      $region11: #{head_forward.1} parent=5 // pred_region
        %s99 = ssub.s32 %s12, 1
        // Predicated region
        $region13: #{head_forward.1} parent=11 // pred_check
          %p100 = pneg %p59
        $region14: #{head_forward.1} parent=11 // pred_check_branch
          %102 = sbr.rel (%p100) target = $region16
        $region15: #{head_forward.1} parent=11 // pred_region
          %104 = vsyncadd [#allocation6], 0
          %s105 = sshll.u32 %s1, 4
          %s106 = int_to_ptr.hbm [resolvable:$true] %s105
          %s107 = sshll.u32 [#allocation5], 4
          %s108 = int_to_ptr.vmem [resolvable:$true] %s107
          %113 = dma.hbm_to_vmem [thread:$0]  %s106, 9216, %s108, [#allocation6], 192, 192, 12
        $region16: #{head_forward.1} parent=11 // pred_fallthru
          _
      $region12: #{head_forward.1} parent=5 // pred_fallthru
        _
      %p114 = scmp.lt.s32.totalorder %s12, 2
      // Predicated region
      $region17: #{head_forward.1} parent=5 // pred_check
        %p115 = pneg %p114
      $region18: #{head_forward.1} parent=5 // pred_check_branch
        %117 = sbr.rel (%p115) target = $region20
      $region19: #{head_forward.1} parent=5 // pred_region
        // Predicated region
        $region21: #{head_forward.1} parent=19 // pred_check
          %p118 = pneg %p32
        $region22: #{head_forward.1} parent=19 // pred_check_branch
          %120 = sbr.rel (%p118) target = $region24
        $region23: #{head_forward.1} parent=19 // pred_region
          %s121 = sand.u32 %s22, 1
          %s122 = scalar_lea.sflag [#allocation4], %s121
          %s123 = sand.u32 %s22, 1
          %s124 = smul.addr %s123, 384
          %s125 = scalar_lea.vmem [#allocation3], %s124
          %127 = vsyncadd %s122, 0
          %s128 = smul.addr %s12, 48
          %s129 = smul.addr %s128, 8
          %s130 = scalar_lea.hbm %s0, %s129
          %s131 = sshll.u32 %s130, 4
          %s132 = int_to_ptr.hbm [resolvable:$true] %s131
          %s133 = sshll.u32 %s125, 4
          %s134 = int_to_ptr.vmem [resolvable:$true] %s133
          %139 = dma.hbm_to_vmem [thread:$0]  %s132, 6144, %s134, %s122, 384, 384, 24
        $region24: #{head_forward.1} parent=19 // pred_fallthru
          _
      $region20: #{head_forward.1} parent=5 // pred_fallthru
        _
      %p140 = scmp.le.s32.totalorder 1, %s12
      %p141 = scmp.lt.s32.totalorder %s12, 3
      %p142 = pnand %p140, %p141
      %p143 = pneg %p142
      // Predicated region
      $region25: #{head_forward.1} parent=5 // pred_check
        _
      $region26: #{head_forward.1} parent=5 // pred_check_branch
        %145 = sbr.rel (%p142) target = $region28
      $region27: #{head_forward.1} parent=5 // pred_region
        %s146 = ssub.s32 %s12, 1
        %s147 = sand.u32 %s25, 1
        %s148 = scalar_lea.sflag [#allocation4], %s147
        %s149 = sand.u32 %s25, 1
        %s150 = smul.addr %s149, 384
        %s151 = scalar_lea.vmem [#allocation3], %s150
        // Predicated region
        $region29: #{head_forward.1} parent=27 // pred_check
          %p152 = pneg %p38
        $region30: #{head_forward.1} parent=27 // pred_check_branch
          %154 = sbr.rel (%p152) target = $region32
        $region31: #{head_forward.1} parent=27 // pred_region
          %156 = dma.done %s148, 6144
        $region32: #{head_forward.1} parent=27 // pred_fallthru
          _
        // Predicated region
        $region33: #{head_forward.1} parent=27 // pred_check
          %p157 = pneg %p59
        $region34: #{head_forward.1} parent=27 // pred_check_branch
          %159 = sbr.rel (%p157) target = $region36
        $region35: #{head_forward.1} parent=27 // pred_region
          %161 = dma.done [#allocation6], 9216
        $region36: #{head_forward.1} parent=27 // pred_fallthru
          _
        %s162 = sand.u32 %s25, 1
        %s163 = scalar_lea.sflag [#allocation4], %s162
        %s164 = sand.u32 %s25, 1
        %s165 = smul.addr %s164, 384
        %s166 = scalar_lea.vmem [#allocation3], %s165
        %p167 = pneg %p38
        %p168 = pneg %p35
        %p169 = pneg %p59
        %p170 = pneg %p56
        %p171 = pneg %p85
        %p172 = pneg %p82
        %p173 = scmp.lt.s32.totalorder %s17, 1
        %s174 = scalar_select %p173, %s17, 1
        %s175 = smul.addr %s174, 16
        %s176 = smul.addr %s175, 8
        %s177 = scalar_lea.vmem %s2, %s176
        %p178 = scmp.lt.s32.totalorder %s17, 1
        %s179 = scalar_select %p178, %s17, 1
        %s180 = smul.addr %s179, 16
        %s181 = smul.addr %s180, 8
        %s182 = scalar_lea.vmem %s2, %s181
        %v183 = vld [vmem:[%s151] sm:$0xff]
        %v184 = vld [vmem:[%s151 + $0x8] sm:$0xff]
        %v185 = vld [vmem:[%s151 + $0x10] sm:$0xff]
        %v186 = vld [vmem:[%s151 + $0x18] sm:$0xff]
        %v187 = vld [vmem:[%s151 + $0x20] sm:$0xff]
        %v188 = vld [vmem:[%s151 + $0x28] sm:$0xff]
        %v189 = vld [vmem:[%s151 + $0x30] sm:$0xff]
        %v190 = vld [vmem:[%s151 + $0x38] sm:$0xff]
        %v191 = vld [vmem:[%s151 + $0x40] sm:$0xff]
        %v192 = vld [vmem:[%s151 + $0x48] sm:$0xff]
        %v193 = vld [vmem:[%s151 + $0x50] sm:$0xff]
        %v194 = vld [vmem:[%s151 + $0x58] sm:$0xff]
        %v195 = vld [vmem:[%s151 + $0x60] sm:$0xff]
        %v196 = vld [vmem:[%s151 + $0x68] sm:$0xff]
        %v197 = vld [vmem:[%s151 + $0x70] sm:$0xff]
        %v198 = vld [vmem:[%s151 + $0x78] sm:$0xff]
        %v199 = vld [vmem:[%s151 + $0x80] sm:$0xff]
        %v200 = vld [vmem:[%s151 + $0x88] sm:$0xff]
        %v201 = vld [vmem:[%s151 + $0x90] sm:$0xff]
        %v202 = vld [vmem:[%s151 + $0x98] sm:$0xff]
        %v203 = vld [vmem:[%s151 + $0xa0] sm:$0xff]
        %v204 = vld [vmem:[%s151 + $0xa8] sm:$0xff]
        %v205 = vld [vmem:[%s151 + $0xb0] sm:$0xff]
        %v206 = vld [vmem:[%s151 + $0xb8] sm:$0xff]
        %v207 = vld [vmem:[%s151 + $0xc0] sm:$0xff]
        %v208 = vld [vmem:[%s151 + $0xc8] sm:$0xff]
        %v209 = vld [vmem:[%s151 + $0xd0] sm:$0xff]
        %v210 = vld [vmem:[%s151 + $0xd8] sm:$0xff]
        %v211 = vld [vmem:[%s151 + $0xe0] sm:$0xff]
        %v212 = vld [vmem:[%s151 + $0xe8] sm:$0xff]
        %v213 = vld [vmem:[%s151 + $0xf0] sm:$0xff]
        %v214 = vld [vmem:[%s151 + $0xf8] sm:$0xff]
        %v215 = vld [vmem:[%s151 + $0x100] sm:$0xff]
        %v216 = vld [vmem:[%s151 + $0x108] sm:$0xff]
        %v217 = vld [vmem:[%s151 + $0x110] sm:$0xff]
        %v218 = vld [vmem:[%s151 + $0x118] sm:$0xff]
        %v219 = vld [vmem:[%s151 + $0x120] sm:$0xff]
        %v220 = vld [vmem:[%s151 + $0x128] sm:$0xff]
        %v221 = vld [vmem:[%s151 + $0x130] sm:$0xff]
        %v222 = vld [vmem:[%s151 + $0x138] sm:$0xff]
        %v223 = vld [vmem:[%s151 + $0x140] sm:$0xff]
        %v224 = vld [vmem:[%s151 + $0x148] sm:$0xff]
        %v225 = vld [vmem:[%s151 + $0x150] sm:$0xff]
        %v226 = vld [vmem:[%s151 + $0x158] sm:$0xff]
        %v227 = vld [vmem:[%s151 + $0x160] sm:$0xff]
        %v228 = vld [vmem:[%s151 + $0x168] sm:$0xff]
        %v229 = vld [vmem:[%s151 + $0x170] sm:$0xff]
        %v230 = vld [vmem:[%s151 + $0x178] sm:$0xff]
        %v231 = vpack.c.bf16 %v186, %v183
        %v232 = vpack.c.bf16 %v187, %v184
        %v233 = vpack.c.bf16 %v188, %v185
        %v234 = vpack.c.bf16 %v192, %v189
        %v235 = vpack.c.bf16 %v193, %v190
        %v236 = vpack.c.bf16 %v194, %v191
        %v237 = vpack.c.bf16 %v198, %v195
        %v238 = vpack.c.bf16 %v199, %v196
        %v239 = vpack.c.bf16 %v200, %v197
        %v240 = vpack.c.bf16 %v204, %v201
        %v241 = vpack.c.bf16 %v205, %v202
        %v242 = vpack.c.bf16 %v206, %v203
        %v243 = vpack.c.bf16 %v210, %v207
        %v244 = vpack.c.bf16 %v211, %v208
        %v245 = vpack.c.bf16 %v212, %v209
        %v246 = vpack.c.bf16 %v216, %v213
        %v247 = vpack.c.bf16 %v217, %v214
        %v248 = vpack.c.bf16 %v218, %v215
        %v249 = vpack.c.bf16 %v222, %v219
        %v250 = vpack.c.bf16 %v223, %v220
        %v251 = vpack.c.bf16 %v224, %v221
        %v252 = vpack.c.bf16 %v228, %v225
        %v253 = vpack.c.bf16 %v229, %v226
        %v254 = vpack.c.bf16 %v230, %v227
        %v255 = vld [vmem:[#allocation5] sm:$0xff]
        %v256 = vld [vmem:[#allocation5 + $0x8] sm:$0xf]
        %v257 = vld [vmem:[#allocation5 + $0xc] sm:$0xff]
        %v258 = vld [vmem:[#allocation5 + $0x14] sm:$0xf]
        %v259 = vld [vmem:[#allocation5 + $0x18] sm:$0xff]
        %v260 = vld [vmem:[#allocation5 + $0x20] sm:$0xf]
        %v261 = vld [vmem:[#allocation5 + $0x24] sm:$0xff]
        %v262 = vld [vmem:[#allocation5 + $0x2c] sm:$0xf]
        %v263 = vld [vmem:[#allocation5 + $0x30] sm:$0xff]
        %v264 = vld [vmem:[#allocation5 + $0x38] sm:$0xf]
        %v265 = vld [vmem:[#allocation5 + $0x3c] sm:$0xff]
        %v266 = vld [vmem:[#allocation5 + $0x44] sm:$0xf]
        %v267 = vld [vmem:[#allocation5 + $0x48] sm:$0xff]
        %v268 = vld [vmem:[#allocation5 + $0x50] sm:$0xf]
        %v269 = vld [vmem:[#allocation5 + $0x54] sm:$0xff]
        %v270 = vld [vmem:[#allocation5 + $0x5c] sm:$0xf]
        %v271 = vld [vmem:[#allocation5 + $0x60] sm:$0xff]
        %v272 = vld [vmem:[#allocation5 + $0x68] sm:$0xf]
        %v273 = vld [vmem:[#allocation5 + $0x6c] sm:$0xff]
        %v274 = vld [vmem:[#allocation5 + $0x74] sm:$0xf]
        %v275 = vld [vmem:[#allocation5 + $0x78] sm:$0xff]
        %v276 = vld [vmem:[#allocation5 + $0x80] sm:$0xf]
        %v277 = vld [vmem:[#allocation5 + $0x84] sm:$0xff]
        %v278 = vld [vmem:[#allocation5 + $0x8c] sm:$0xf]
        %v279 = vld [vmem:[#allocation5 + $0x90] sm:$0xff]
        %v280 = vld [vmem:[#allocation5 + $0x98] sm:$0xf]
        %v281 = vld [vmem:[#allocation5 + $0x9c] sm:$0xff]
        %v282 = vld [vmem:[#allocation5 + $0xa4] sm:$0xf]
        %v283 = vld [vmem:[#allocation5 + $0xa8] sm:$0xff]
        %v284 = vld [vmem:[#allocation5 + $0xb0] sm:$0xf]
        %v285 = vld [vmem:[#allocation5 + $0xb4] sm:$0xff]
        %v286 = vld [vmem:[#allocation5 + $0xbc] sm:$0xf]
        %v287 = vld [vmem:[#allocation5 + $0xc0] sm:$0xff]
        %v288 = vld [vmem:[#allocation5 + $0xc8] sm:$0xf]
        %v289 = vld [vmem:[#allocation5 + $0xcc] sm:$0xff]
        %v290 = vld [vmem:[#allocation5 + $0xd4] sm:$0xf]
        %v291 = vld [vmem:[#allocation5 + $0xd8] sm:$0xff]
        %v292 = vld [vmem:[#allocation5 + $0xe0] sm:$0xf]
        %v293 = vld [vmem:[#allocation5 + $0xe4] sm:$0xff]
        %v294 = vld [vmem:[#allocation5 + $0xec] sm:$0xf]
        %v295 = vld [vmem:[#allocation5 + $0xf0] sm:$0xff]
        %v296 = vld [vmem:[#allocation5 + $0xf8] sm:$0xf]
        %v297 = vld [vmem:[#allocation5 + $0xfc] sm:$0xff]
        %v298 = vld [vmem:[#allocation5 + $0x104] sm:$0xf]
        %v299 = vld [vmem:[#allocation5 + $0x108] sm:$0xff]
        %v300 = vld [vmem:[#allocation5 + $0x110] sm:$0xf]
        %v301 = vld [vmem:[#allocation5 + $0x114] sm:$0xff]
        %v302 = vld [vmem:[#allocation5 + $0x11c] sm:$0xf]
        %v303 = vld [vmem:[#allocation5 + $0x120] sm:$0xff]
        %v304 = vld [vmem:[#allocation5 + $0x128] sm:$0xf]
        %v305 = vld [vmem:[#allocation5 + $0x12c] sm:$0xff]
        %v306 = vld [vmem:[#allocation5 + $0x134] sm:$0xf]
        %v307 = vld [vmem:[#allocation5 + $0x138] sm:$0xff]
        %v308 = vld [vmem:[#allocation5 + $0x140] sm:$0xf]
        %v309 = vld [vmem:[#allocation5 + $0x144] sm:$0xff]
        %v310 = vld [vmem:[#allocation5 + $0x14c] sm:$0xf]
        %v311 = vld [vmem:[#allocation5 + $0x150] sm:$0xff]
        %v312 = vld [vmem:[#allocation5 + $0x158] sm:$0xf]
        %v313 = vld [vmem:[#allocation5 + $0x15c] sm:$0xff]
        %v314 = vld [vmem:[#allocation5 + $0x164] sm:$0xf]
        %v315 = vld [vmem:[#allocation5 + $0x168] sm:$0xff]
        %v316 = vld [vmem:[#allocation5 + $0x170] sm:$0xf]
        %v317 = vld [vmem:[#allocation5 + $0x174] sm:$0xff]
        %v318 = vld [vmem:[#allocation5 + $0x17c] sm:$0xf]
        %v319 = vld [vmem:[#allocation5 + $0x180] sm:$0xff]
        %v320 = vld [vmem:[#allocation5 + $0x188] sm:$0xf]
        %v321 = vld [vmem:[#allocation5 + $0x18c] sm:$0xff]
        %v322 = vld [vmem:[#allocation5 + $0x194] sm:$0xf]
        %v323 = vld [vmem:[#allocation5 + $0x198] sm:$0xff]
        %v324 = vld [vmem:[#allocation5 + $0x1a0] sm:$0xf]
        %v325 = vld [vmem:[#allocation5 + $0x1a4] sm:$0xff]
        %v326 = vld [vmem:[#allocation5 + $0x1ac] sm:$0xf]
        %v327 = vld [vmem:[#allocation5 + $0x1b0] sm:$0xff]
        %v328 = vld [vmem:[#allocation5 + $0x1b8] sm:$0xf]
        %v329 = vld [vmem:[#allocation5 + $0x1bc] sm:$0xff]
        %v330 = vld [vmem:[#allocation5 + $0x1c4] sm:$0xf]
        %v331 = vld [vmem:[#allocation5 + $0x1c8] sm:$0xff]
        %v332 = vld [vmem:[#allocation5 + $0x1d0] sm:$0xf]
        %v333 = vld [vmem:[#allocation5 + $0x1d4] sm:$0xff]
        %v334 = vld [vmem:[#allocation5 + $0x1dc] sm:$0xf]
        %v335 = vld [vmem:[#allocation5 + $0x1e0] sm:$0xff]
        %v336 = vld [vmem:[#allocation5 + $0x1e8] sm:$0xf]
        %v337 = vld [vmem:[#allocation5 + $0x1ec] sm:$0xff]
        %v338 = vld [vmem:[#allocation5 + $0x1f4] sm:$0xf]
        %v339 = vld [vmem:[#allocation5 + $0x1f8] sm:$0xff]
        %v340 = vld [vmem:[#allocation5 + $0x200] sm:$0xf]
        %v341 = vld [vmem:[#allocation5 + $0x204] sm:$0xff]
        %v342 = vld [vmem:[#allocation5 + $0x20c] sm:$0xf]
        %v343 = vld [vmem:[#allocation5 + $0x210] sm:$0xff]
        %v344 = vld [vmem:[#allocation5 + $0x218] sm:$0xf]
        %v345 = vld [vmem:[#allocation5 + $0x21c] sm:$0xff]
        %v346 = vld [vmem:[#allocation5 + $0x224] sm:$0xf]
        %v347 = vld [vmem:[#allocation5 + $0x228] sm:$0xff]
        %v348 = vld [vmem:[#allocation5 + $0x230] sm:$0xf]
        %v349 = vld [vmem:[#allocation5 + $0x234] sm:$0xff]
        %v350 = vld [vmem:[#allocation5 + $0x23c] sm:$0xf]
        %v447 = vunpack.c.l.b16 %v255
        %v448 = vunpack.c.h.b16 %v255
        %v449 = vunpack.c.l.b16 %v256
        %v450 = vunpack.c.l.b16 %v257
        %v451 = vunpack.c.h.b16 %v257
        %v452 = vunpack.c.l.b16 %v258
        %v453 = vunpack.c.l.b16 %v259
        %v454 = vunpack.c.h.b16 %v259
        %v455 = vunpack.c.l.b16 %v260
        %v456 = vunpack.c.l.b16 %v261
        %v457 = vunpack.c.h.b16 %v261
        %v458 = vunpack.c.l.b16 %v262
        %v459 = vunpack.c.l.b16 %v263
        %v460 = vunpack.c.h.b16 %v263
        %v461 = vunpack.c.l.b16 %v264
        %v462 = vunpack.c.l.b16 %v265
        %v463 = vunpack.c.h.b16 %v265
        %v464 = vunpack.c.l.b16 %v266
        %v465 = vunpack.c.l.b16 %v267
        %v466 = vunpack.c.h.b16 %v267
        %v467 = vunpack.c.l.b16 %v268
        %v468 = vunpack.c.l.b16 %v269
        %v469 = vunpack.c.h.b16 %v269
        %v470 = vunpack.c.l.b16 %v270
        %v471 = vunpack.c.l.b16 %v271
        %v472 = vunpack.c.h.b16 %v271
        %v473 = vunpack.c.l.b16 %v272
        %v474 = vunpack.c.l.b16 %v273
        %v475 = vunpack.c.h.b16 %v273
        %v476 = vunpack.c.l.b16 %v274
        %v477 = vunpack.c.l.b16 %v275
        %v478 = vunpack.c.h.b16 %v275
        %v479 = vunpack.c.l.b16 %v276
        %v480 = vunpack.c.l.b16 %v277
        %v481 = vunpack.c.h.b16 %v277
        %v482 = vunpack.c.l.b16 %v278
        %v483 = vunpack.c.l.b16 %v279
        %v484 = vunpack.c.h.b16 %v279
        %v485 = vunpack.c.l.b16 %v280
        %v486 = vunpack.c.l.b16 %v281
        %v487 = vunpack.c.h.b16 %v281
        %v488 = vunpack.c.l.b16 %v282
        %v489 = vunpack.c.l.b16 %v283
        %v490 = vunpack.c.h.b16 %v283
        %v491 = vunpack.c.l.b16 %v284
        %v492 = vunpack.c.l.b16 %v285
        %v493 = vunpack.c.h.b16 %v285
        %v494 = vunpack.c.l.b16 %v286
        %v495 = vunpack.c.l.b16 %v287
        %v496 = vunpack.c.h.b16 %v287
        %v497 = vunpack.c.l.b16 %v288
        %v498 = vunpack.c.l.b16 %v289
        %v499 = vunpack.c.h.b16 %v289
        %v500 = vunpack.c.l.b16 %v290
        %v501 = vunpack.c.l.b16 %v291
        %v502 = vunpack.c.h.b16 %v291
        %v503 = vunpack.c.l.b16 %v292
        %v504 = vunpack.c.l.b16 %v293
        %v505 = vunpack.c.h.b16 %v293
        %v506 = vunpack.c.l.b16 %v294
        %v507 = vunpack.c.l.b16 %v295
        %v508 = vunpack.c.h.b16 %v295
        %v509 = vunpack.c.l.b16 %v296
        %v510 = vunpack.c.l.b16 %v297
        %v511 = vunpack.c.h.b16 %v297
        %v512 = vunpack.c.l.b16 %v298
        %v513 = vunpack.c.l.b16 %v299
        %v514 = vunpack.c.h.b16 %v299
        %v515 = vunpack.c.l.b16 %v300
        %v516 = vunpack.c.l.b16 %v301
        %v517 = vunpack.c.h.b16 %v301
        %v518 = vunpack.c.l.b16 %v302
        %v519 = vunpack.c.l.b16 %v303
        %v520 = vunpack.c.h.b16 %v303
        %v521 = vunpack.c.l.b16 %v304
        %v522 = vunpack.c.l.b16 %v305
        %v523 = vunpack.c.h.b16 %v305
        %v524 = vunpack.c.l.b16 %v306
        %v525 = vunpack.c.l.b16 %v307
        %v526 = vunpack.c.h.b16 %v307
        %v527 = vunpack.c.l.b16 %v308
        %v528 = vunpack.c.l.b16 %v309
        %v529 = vunpack.c.h.b16 %v309
        %v530 = vunpack.c.l.b16 %v310
        %v531 = vunpack.c.l.b16 %v311
        %v532 = vunpack.c.h.b16 %v311
        %v533 = vunpack.c.l.b16 %v312
        %v534 = vunpack.c.l.b16 %v313
        %v535 = vunpack.c.h.b16 %v313
        %v536 = vunpack.c.l.b16 %v314
        %v537 = vunpack.c.l.b16 %v315
        %v538 = vunpack.c.h.b16 %v315
        %v539 = vunpack.c.l.b16 %v316
        %v540 = vunpack.c.l.b16 %v317
        %v541 = vunpack.c.h.b16 %v317
        %v542 = vunpack.c.l.b16 %v318
        %v543 = vunpack.c.l.b16 %v319
        %v544 = vunpack.c.h.b16 %v319
        %v545 = vunpack.c.l.b16 %v320
        %v546 = vunpack.c.l.b16 %v321
        %v547 = vunpack.c.h.b16 %v321
        %v548 = vunpack.c.l.b16 %v322
        %v549 = vunpack.c.l.b16 %v323
        %v550 = vunpack.c.h.b16 %v323
        %v551 = vunpack.c.l.b16 %v324
        %v552 = vunpack.c.l.b16 %v325
        %v553 = vunpack.c.h.b16 %v325
        %v554 = vunpack.c.l.b16 %v326
        %v555 = vunpack.c.l.b16 %v327
        %v556 = vunpack.c.h.b16 %v327
        %v557 = vunpack.c.l.b16 %v328
        %v558 = vunpack.c.l.b16 %v329
        %v559 = vunpack.c.h.b16 %v329
        %v560 = vunpack.c.l.b16 %v330
        %v561 = vunpack.c.l.b16 %v331
        %v562 = vunpack.c.h.b16 %v331
        %v563 = vunpack.c.l.b16 %v332
        %v564 = vunpack.c.l.b16 %v333
        %v565 = vunpack.c.h.b16 %v333
        %v566 = vunpack.c.l.b16 %v334
        %v567 = vunpack.c.l.b16 %v335
        %v568 = vunpack.c.h.b16 %v335
        %v569 = vunpack.c.l.b16 %v336
        %v570 = vunpack.c.l.b16 %v337
        %v571 = vunpack.c.h.b16 %v337
        %v572 = vunpack.c.l.b16 %v338
        %v573 = vunpack.c.l.b16 %v339
        %v574 = vunpack.c.h.b16 %v339
        %v575 = vunpack.c.l.b16 %v340
        %v576 = vunpack.c.l.b16 %v341
        %v577 = vunpack.c.h.b16 %v341
        %v578 = vunpack.c.l.b16 %v342
        %v579 = vunpack.c.l.b16 %v343
        %v580 = vunpack.c.h.b16 %v343
        %v581 = vunpack.c.l.b16 %v344
        %v582 = vunpack.c.l.b16 %v345
        %v583 = vunpack.c.h.b16 %v345
        %v584 = vunpack.c.l.b16 %v346
        %v585 = vunpack.c.l.b16 %v347
        %v586 = vunpack.c.h.b16 %v347
        %v587 = vunpack.c.l.b16 %v348
        %v588 = vunpack.c.l.b16 %v349
        %v589 = vunpack.c.h.b16 %v349
        %v590 = vunpack.c.l.b16 %v350
        %v591 = vpack.c.b16 %v450, %v447
        %v592 = vpack.c.b16 %v451, %v448
        %v593 = vpack.c.b16 %v452, %v449
        %v594 = vpack.c.b16 %v456, %v453
        %v595 = vpack.c.b16 %v457, %v454
        %v596 = vpack.c.b16 %v458, %v455
        %v597 = vpack.c.b16 %v462, %v459
        %v598 = vpack.c.b16 %v463, %v460
        %v599 = vpack.c.b16 %v464, %v461
        %v600 = vpack.c.b16 %v468, %v465
        %v601 = vpack.c.b16 %v469, %v466
        %v602 = vpack.c.b16 %v470, %v467
        %v603 = vpack.c.b16 %v474, %v471
        %v604 = vpack.c.b16 %v475, %v472
        %v605 = vpack.c.b16 %v476, %v473
        %v606 = vpack.c.b16 %v480, %v477
        %v607 = vpack.c.b16 %v481, %v478
        %v608 = vpack.c.b16 %v482, %v479
        %v609 = vpack.c.b16 %v486, %v483
        %v610 = vpack.c.b16 %v487, %v484
        %v611 = vpack.c.b16 %v488, %v485
        %v612 = vpack.c.b16 %v492, %v489
        %v613 = vpack.c.b16 %v493, %v490
        %v614 = vpack.c.b16 %v494, %v491
        %v615 = vpack.c.b16 %v498, %v495
        %v616 = vpack.c.b16 %v499, %v496
        %v617 = vpack.c.b16 %v500, %v497
        %v618 = vpack.c.b16 %v504, %v501
        %v619 = vpack.c.b16 %v505, %v502
        %v620 = vpack.c.b16 %v506, %v503
        %v621 = vpack.c.b16 %v510, %v507
        %v622 = vpack.c.b16 %v511, %v508
        %v623 = vpack.c.b16 %v512, %v509
        %v624 = vpack.c.b16 %v516, %v513
        %v625 = vpack.c.b16 %v517, %v514
        %v626 = vpack.c.b16 %v518, %v515
        %v627 = vpack.c.b16 %v522, %v519
        %v628 = vpack.c.b16 %v523, %v520
        %v629 = vpack.c.b16 %v524, %v521
        %v630 = vpack.c.b16 %v528, %v525
        %v631 = vpack.c.b16 %v529, %v526
        %v632 = vpack.c.b16 %v530, %v527
        %v633 = vpack.c.b16 %v534, %v531
        %v634 = vpack.c.b16 %v535, %v532
        %v635 = vpack.c.b16 %v536, %v533
        %v636 = vpack.c.b16 %v540, %v537
        %v637 = vpack.c.b16 %v541, %v538
        %v638 = vpack.c.b16 %v542, %v539
        %v639 = vpack.c.b16 %v546, %v543
        %v640 = vpack.c.b16 %v547, %v544
        %v641 = vpack.c.b16 %v548, %v545
        %v642 = vpack.c.b16 %v552, %v549
        %v643 = vpack.c.b16 %v553, %v550
        %v644 = vpack.c.b16 %v554, %v551
        %v645 = vpack.c.b16 %v558, %v555
        %v646 = vpack.c.b16 %v559, %v556
        %v647 = vpack.c.b16 %v560, %v557
        %v648 = vpack.c.b16 %v564, %v561
        %v649 = vpack.c.b16 %v565, %v562
        %v650 = vpack.c.b16 %v566, %v563
        %v651 = vpack.c.b16 %v570, %v567
        %v652 = vpack.c.b16 %v571, %v568
        %v653 = vpack.c.b16 %v572, %v569
        %v654 = vpack.c.b16 %v576, %v573
        %v655 = vpack.c.b16 %v577, %v574
        %v656 = vpack.c.b16 %v578, %v575
        %v657 = vpack.c.b16 %v582, %v579
        %v658 = vpack.c.b16 %v583, %v580
        %v659 = vpack.c.b16 %v584, %v581
        %v660 = vpack.c.b16 %v588, %v585
        %v661 = vpack.c.b16 %v589, %v586
        %v662 = vpack.c.b16 %v590, %v587
        %735 = vmatpush.bf16.msra.mxu0 %v612
        %736 = vmatpush.bf16.msra.mxu0 %v609
        %737 = vmatpush.bf16.msra.mxu0 %v606
        %738 = vmatpush.bf16.msra.mxu0 %v603
        %739 = vmatpush.bf16.msra.mxu0 %v600
        %740 = vmatpush.bf16.msra.mxu0 %v597
        %741 = vmatpush.bf16.msra.mxu0 %v594
        %742 = vmatpush.bf16.msra.mxu0 %v591
        %743 = vmatmul.bf16.gmra.mxu0 %v231
        %v744 = vpop.f32.mrf.mxu0
        %v745 = vadd.f32 0.0, %v744
        %v746 = vpop.f32.mrf.mxu0
        %v747 = vadd.f32 0.0, %v746
        %748 = vmatmul.bf16.gmra.mxu0 %v234
        %v749 = vpop.f32.mrf.mxu0
        %v750 = vadd.f32 0.0, %v749
        %v751 = vpop.f32.mrf.mxu0
        %v752 = vadd.f32 0.0, %v751
        %753 = vmatmul.bf16.gmra.mxu0 %v237
        %v754 = vpop.f32.mrf.mxu0
        %v755 = vadd.f32 0.0, %v754
        %v756 = vpop.f32.mrf.mxu0
        %v757 = vadd.f32 0.0, %v756
        %758 = vmatmul.bf16.gmra.mxu0 %v240
        %v759 = vpop.f32.mrf.mxu0
        %v760 = vadd.f32 0.0, %v759
        %v761 = vpop.f32.mrf.mxu0
        %v762 = vadd.f32 0.0, %v761
        %763 = vmatmul.bf16.gmra.mxu0 %v243
        %v764 = vpop.f32.mrf.mxu0
        %v765 = vadd.f32 0.0, %v764
        %v766 = vpop.f32.mrf.mxu0
        %v767 = vadd.f32 0.0, %v766
        %768 = vmatmul.bf16.gmra.mxu0 %v246
        %v769 = vpop.f32.mrf.mxu0
        %v770 = vadd.f32 0.0, %v769
        %v771 = vpop.f32.mrf.mxu0
        %v772 = vadd.f32 0.0, %v771
        %773 = vmatmul.bf16.gmra.mxu0 %v249
        %v774 = vpop.f32.mrf.mxu0
        %v775 = vadd.f32 0.0, %v774
        %v776 = vpop.f32.mrf.mxu0
        %v777 = vadd.f32 0.0, %v776
        %778 = vmatmul.bf16.gmra.mxu0 %v252
        %v779 = vpop.f32.mrf.mxu0
        %v780 = vadd.f32 0.0, %v779
        %v781 = vpop.f32.mrf.mxu0
        %v782 = vadd.f32 0.0, %v781
        %783 = vdwg.mxu0
        %784 = vmatpush.bf16.msra.mxu0 %v636
        %785 = vmatpush.bf16.msra.mxu0 %v633
        %786 = vmatpush.bf16.msra.mxu0 %v630
        %787 = vmatpush.bf16.msra.mxu0 %v627
        %788 = vmatpush.bf16.msra.mxu0 %v624
        %789 = vmatpush.bf16.msra.mxu0 %v621
        %790 = vmatpush.bf16.msra.mxu0 %v618
        %791 = vmatpush.bf16.msra.mxu0 %v615
        %792 = vmatmul.bf16.gmra.mxu0 %v232
        %v793 = vpop.f32.mrf.mxu0
        %v794 = vadd.f32 %v745, %v793
        %v795 = vpop.f32.mrf.mxu0
        %v796 = vadd.f32 %v747, %v795
        %797 = vmatmul.bf16.gmra.mxu0 %v235
        %v798 = vpop.f32.mrf.mxu0
        %v799 = vadd.f32 %v750, %v798
        %v800 = vpop.f32.mrf.mxu0
        %v801 = vadd.f32 %v752, %v800
        %802 = vmatmul.bf16.gmra.mxu0 %v238
        %v803 = vpop.f32.mrf.mxu0
        %v804 = vadd.f32 %v755, %v803
        %v805 = vpop.f32.mrf.mxu0
        %v806 = vadd.f32 %v757, %v805
        %807 = vmatmul.bf16.gmra.mxu0 %v241
        %v808 = vpop.f32.mrf.mxu0
        %v809 = vadd.f32 %v760, %v808
        %v810 = vpop.f32.mrf.mxu0
        %v811 = vadd.f32 %v762, %v810
        %812 = vmatmul.bf16.gmra.mxu0 %v244
        %v813 = vpop.f32.mrf.mxu0
        %v814 = vadd.f32 %v765, %v813
        %v815 = vpop.f32.mrf.mxu0
        %v816 = vadd.f32 %v767, %v815
        %817 = vmatmul.bf16.gmra.mxu0 %v247
        %v818 = vpop.f32.mrf.mxu0
        %v819 = vadd.f32 %v770, %v818
        %v820 = vpop.f32.mrf.mxu0
        %v821 = vadd.f32 %v772, %v820
        %822 = vmatmul.bf16.gmra.mxu0 %v250
        %v823 = vpop.f32.mrf.mxu0
        %v824 = vadd.f32 %v775, %v823
        %v825 = vpop.f32.mrf.mxu0
        %v826 = vadd.f32 %v777, %v825
        %827 = vmatmul.bf16.gmra.mxu0 %v253
        %v828 = vpop.f32.mrf.mxu0
        %v829 = vadd.f32 %v780, %v828
        %v830 = vpop.f32.mrf.mxu0
        %v831 = vadd.f32 %v782, %v830
        %832 = vdwg.mxu0
        %833 = vmatpush.bf16.msra.mxu0 %v660
        %834 = vmatpush.bf16.msra.mxu0 %v657
        %835 = vmatpush.bf16.msra.mxu0 %v654
        %836 = vmatpush.bf16.msra.mxu0 %v651
        %837 = vmatpush.bf16.msra.mxu0 %v648
        %838 = vmatpush.bf16.msra.mxu0 %v645
        %839 = vmatpush.bf16.msra.mxu0 %v642
        %840 = vmatpush.bf16.msra.mxu0 %v639
        %841 = vmatmul.bf16.gmra.mxu0 %v233
        %v842 = vpop.f32.mrf.mxu0
        %v843 = vadd.f32 %v794, %v842
        %v844 = vpop.f32.mrf.mxu0
        %v845 = vadd.f32 %v796, %v844
        %846 = vmatmul.bf16.gmra.mxu0 %v236
        %v847 = vpop.f32.mrf.mxu0
        %v848 = vadd.f32 %v799, %v847
        %v849 = vpop.f32.mrf.mxu0
        %v850 = vadd.f32 %v801, %v849
        %851 = vmatmul.bf16.gmra.mxu0 %v239
        %v852 = vpop.f32.mrf.mxu0
        %v853 = vadd.f32 %v804, %v852
        %v854 = vpop.f32.mrf.mxu0
        %v855 = vadd.f32 %v806, %v854
        %856 = vmatmul.bf16.gmra.mxu0 %v242
        %v857 = vpop.f32.mrf.mxu0
        %v858 = vadd.f32 %v809, %v857
        %v859 = vpop.f32.mrf.mxu0
        %v860 = vadd.f32 %v811, %v859
        %861 = vmatmul.bf16.gmra.mxu0 %v245
        %v862 = vpop.f32.mrf.mxu0
        %v863 = vadd.f32 %v814, %v862
        %v864 = vpop.f32.mrf.mxu0
        %v865 = vadd.f32 %v816, %v864
        %866 = vmatmul.bf16.gmra.mxu0 %v248
        %v867 = vpop.f32.mrf.mxu0
        %v868 = vadd.f32 %v819, %v867
        %v869 = vpop.f32.mrf.mxu0
        %v870 = vadd.f32 %v821, %v869
        %871 = vmatmul.bf16.gmra.mxu0 %v251
        %v872 = vpop.f32.mrf.mxu0
        %v873 = vadd.f32 %v824, %v872
        %v874 = vpop.f32.mrf.mxu0
        %v875 = vadd.f32 %v826, %v874
        %876 = vmatmul.bf16.gmra.mxu0 %v254
        %v877 = vpop.f32.mrf.mxu0
        %v878 = vadd.f32 %v829, %v877
        %v879 = vpop.f32.mrf.mxu0
        %v880 = vadd.f32 %v831, %v879
        %881 = vdwg.mxu0
        %882 = vmatpush.bf16.msra.mxu0 %v613
        %883 = vmatpush.bf16.msra.mxu0 %v610
        %884 = vmatpush.bf16.msra.mxu0 %v607
        %885 = vmatpush.bf16.msra.mxu0 %v604
        %886 = vmatpush.bf16.msra.mxu0 %v601
        %887 = vmatpush.bf16.msra.mxu0 %v598
        %888 = vmatpush.bf16.msra.mxu0 %v595
        %889 = vmatpush.bf16.msra.mxu0 %v592
        %890 = vmatmul.bf16.gmra.mxu0 %v231
        %v891 = vpop.f32.mrf.mxu0
        %v892 = vadd.f32 0.0, %v891
        %v893 = vpop.f32.mrf.mxu0
        %v894 = vadd.f32 0.0, %v893
        %895 = vmatmul.bf16.gmra.mxu0 %v234
        %v896 = vpop.f32.mrf.mxu0
        %v897 = vadd.f32 0.0, %v896
        %v898 = vpop.f32.mrf.mxu0
        %v899 = vadd.f32 0.0, %v898
        %900 = vmatmul.bf16.gmra.mxu0 %v237
        %v901 = vpop.f32.mrf.mxu0
        %v902 = vadd.f32 0.0, %v901
        %v903 = vpop.f32.mrf.mxu0
        %v904 = vadd.f32 0.0, %v903
        %905 = vmatmul.bf16.gmra.mxu0 %v240
        %v906 = vpop.f32.mrf.mxu0
        %v907 = vadd.f32 0.0, %v906
        %v908 = vpop.f32.mrf.mxu0
        %v909 = vadd.f32 0.0, %v908
        %910 = vmatmul.bf16.gmra.mxu0 %v243
        %v911 = vpop.f32.mrf.mxu0
        %v912 = vadd.f32 0.0, %v911
        %v913 = vpop.f32.mrf.mxu0
        %v914 = vadd.f32 0.0, %v913
        %915 = vmatmul.bf16.gmra.mxu0 %v246
        %v916 = vpop.f32.mrf.mxu0
        %v917 = vadd.f32 0.0, %v916
        %v918 = vpop.f32.mrf.mxu0
        %v919 = vadd.f32 0.0, %v918
        %920 = vmatmul.bf16.gmra.mxu0 %v249
        %v921 = vpop.f32.mrf.mxu0
        %v922 = vadd.f32 0.0, %v921
        %v923 = vpop.f32.mrf.mxu0
        %v924 = vadd.f32 0.0, %v923
        %925 = vmatmul.bf16.gmra.mxu0 %v252
        %v926 = vpop.f32.mrf.mxu0
        %v927 = vadd.f32 0.0, %v926
        %v928 = vpop.f32.mrf.mxu0
        %v929 = vadd.f32 0.0, %v928
        %930 = vdwg.mxu0
        %931 = vmatpush.bf16.msra.mxu0 %v637
        %932 = vmatpush.bf16.msra.mxu0 %v634
        %933 = vmatpush.bf16.msra.mxu0 %v631
        %934 = vmatpush.bf16.msra.mxu0 %v628
        %935 = vmatpush.bf16.msra.mxu0 %v625
        %936 = vmatpush.bf16.msra.mxu0 %v622
        %937 = vmatpush.bf16.msra.mxu0 %v619
        %938 = vmatpush.bf16.msra.mxu0 %v616
        %939 = vmatmul.bf16.gmra.mxu0 %v232
        %v940 = vpop.f32.mrf.mxu0
        %v941 = vadd.f32 %v892, %v940
        %v942 = vpop.f32.mrf.mxu0
        %v943 = vadd.f32 %v894, %v942
        %944 = vmatmul.bf16.gmra.mxu0 %v235
        %v945 = vpop.f32.mrf.mxu0
        %v946 = vadd.f32 %v897, %v945
        %v947 = vpop.f32.mrf.mxu0
        %v948 = vadd.f32 %v899, %v947
        %949 = vmatmul.bf16.gmra.mxu0 %v238
        %v950 = vpop.f32.mrf.mxu0
        %v951 = vadd.f32 %v902, %v950
        %v952 = vpop.f32.mrf.mxu0
        %v953 = vadd.f32 %v904, %v952
        %954 = vmatmul.bf16.gmra.mxu0 %v241
        %v955 = vpop.f32.mrf.mxu0
        %v956 = vadd.f32 %v907, %v955
        %v957 = vpop.f32.mrf.mxu0
        %v958 = vadd.f32 %v909, %v957
        %959 = vmatmul.bf16.gmra.mxu0 %v244
        %v960 = vpop.f32.mrf.mxu0
        %v961 = vadd.f32 %v912, %v960
        %v962 = vpop.f32.mrf.mxu0
        %v963 = vadd.f32 %v914, %v962
        %964 = vmatmul.bf16.gmra.mxu0 %v247
        %v965 = vpop.f32.mrf.mxu0
        %v966 = vadd.f32 %v917, %v965
        %v967 = vpop.f32.mrf.mxu0
        %v968 = vadd.f32 %v919, %v967
        %969 = vmatmul.bf16.gmra.mxu0 %v250
        %v970 = vpop.f32.mrf.mxu0
        %v971 = vadd.f32 %v922, %v970
        %v972 = vpop.f32.mrf.mxu0
        %v973 = vadd.f32 %v924, %v972
        %974 = vmatmul.bf16.gmra.mxu0 %v253
        %v975 = vpop.f32.mrf.mxu0
        %v976 = vadd.f32 %v927, %v975
        %v977 = vpop.f32.mrf.mxu0
        %v978 = vadd.f32 %v929, %v977
        %979 = vdwg.mxu0
        %980 = vmatpush.bf16.msra.mxu0 %v661
        %981 = vmatpush.bf16.msra.mxu0 %v658
        %982 = vmatpush.bf16.msra.mxu0 %v655
        %983 = vmatpush.bf16.msra.mxu0 %v652
        %984 = vmatpush.bf16.msra.mxu0 %v649
        %985 = vmatpush.bf16.msra.mxu0 %v646
        %986 = vmatpush.bf16.msra.mxu0 %v643
        %987 = vmatpush.bf16.msra.mxu0 %v640
        %988 = vmatmul.bf16.gmra.mxu0 %v233
        %v989 = vpop.f32.mrf.mxu0
        %v990 = vadd.f32 %v941, %v989
        %v991 = vpop.f32.mrf.mxu0
        %v992 = vadd.f32 %v943, %v991
        %993 = vmatmul.bf16.gmra.mxu0 %v236
        %v994 = vpop.f32.mrf.mxu0
        %v995 = vadd.f32 %v946, %v994
        %v996 = vpop.f32.mrf.mxu0
        %v997 = vadd.f32 %v948, %v996
        %998 = vmatmul.bf16.gmra.mxu0 %v239
        %v999 = vpop.f32.mrf.mxu0
        %v1000 = vadd.f32 %v951, %v999
        %v1001 = vpop.f32.mrf.mxu0
        %v1002 = vadd.f32 %v953, %v1001
        %1003 = vmatmul.bf16.gmra.mxu0 %v242
        %v1004 = vpop.f32.mrf.mxu0
        %v1005 = vadd.f32 %v956, %v1004
        %v1006 = vpop.f32.mrf.mxu0
        %v1007 = vadd.f32 %v958, %v1006
        %1008 = vmatmul.bf16.gmra.mxu0 %v245
        %v1009 = vpop.f32.mrf.mxu0
        %v1010 = vadd.f32 %v961, %v1009
        %v1011 = vpop.f32.mrf.mxu0
        %v1012 = vadd.f32 %v963, %v1011
        %1013 = vmatmul.bf16.gmra.mxu0 %v248
        %v1014 = vpop.f32.mrf.mxu0
        %v1015 = vadd.f32 %v966, %v1014
        %v1016 = vpop.f32.mrf.mxu0
        %v1017 = vadd.f32 %v968, %v1016
        %1018 = vmatmul.bf16.gmra.mxu0 %v251
        %v1019 = vpop.f32.mrf.mxu0
        %v1020 = vadd.f32 %v971, %v1019
        %v1021 = vpop.f32.mrf.mxu0
        %v1022 = vadd.f32 %v973, %v1021
        %1023 = vmatmul.bf16.gmra.mxu0 %v254
        %v1024 = vpop.f32.mrf.mxu0
        %v1025 = vadd.f32 %v976, %v1024
        %v1026 = vpop.f32.mrf.mxu0
        %v1027 = vadd.f32 %v978, %v1026
        %1028 = vdwg.mxu0
        %1029 = vmatpush.bf16.msra.mxu0 %v614
        %1030 = vmatpush.bf16.msra.mxu0 %v611
        %1031 = vmatpush.bf16.msra.mxu0 %v608
        %1032 = vmatpush.bf16.msra.mxu0 %v605
        %1033 = vmatpush.bf16.msra.mxu0 %v602
        %1034 = vmatpush.bf16.msra.mxu0 %v599
        %1035 = vmatpush.bf16.msra.mxu0 %v596
        %1036 = vmatpush.bf16.msra.mxu0 %v593
        %1037 = vmatmul.bf16.gmra.mxu0 %v231
        %v1038 = vpop.f32.mrf.mxu0
        %v1039 = vadd.f32 0.0, %v1038
        %v1040 = vpop.f32.mrf.mxu0
        %v1041 = vadd.f32 0.0, %v1040
        %1042 = vmatmul.bf16.gmra.mxu0 %v234
        %v1043 = vpop.f32.mrf.mxu0
        %v1044 = vadd.f32 0.0, %v1043
        %v1045 = vpop.f32.mrf.mxu0
        %v1046 = vadd.f32 0.0, %v1045
        %1047 = vmatmul.bf16.gmra.mxu0 %v237
        %v1048 = vpop.f32.mrf.mxu0
        %v1049 = vadd.f32 0.0, %v1048
        %v1050 = vpop.f32.mrf.mxu0
        %v1051 = vadd.f32 0.0, %v1050
        %1052 = vmatmul.bf16.gmra.mxu0 %v240
        %v1053 = vpop.f32.mrf.mxu0
        %v1054 = vadd.f32 0.0, %v1053
        %v1055 = vpop.f32.mrf.mxu0
        %v1056 = vadd.f32 0.0, %v1055
        %1057 = vmatmul.bf16.gmra.mxu0 %v243
        %v1058 = vpop.f32.mrf.mxu0
        %v1059 = vadd.f32 0.0, %v1058
        %v1060 = vpop.f32.mrf.mxu0
        %v1061 = vadd.f32 0.0, %v1060
        %1062 = vmatmul.bf16.gmra.mxu0 %v246
        %v1063 = vpop.f32.mrf.mxu0
        %v1064 = vadd.f32 0.0, %v1063
        %v1065 = vpop.f32.mrf.mxu0
        %v1066 = vadd.f32 0.0, %v1065
        %1067 = vmatmul.bf16.gmra.mxu0 %v249
        %v1068 = vpop.f32.mrf.mxu0
        %v1069 = vadd.f32 0.0, %v1068
        %v1070 = vpop.f32.mrf.mxu0
        %v1071 = vadd.f32 0.0, %v1070
        %1072 = vmatmul.bf16.gmra.mxu0 %v252
        %v1073 = vpop.f32.mrf.mxu0
        %v1074 = vadd.f32 0.0, %v1073
        %v1075 = vpop.f32.mrf.mxu0
        %v1076 = vadd.f32 0.0, %v1075
        %1077 = vdwg.mxu0
        %1078 = vmatpush.bf16.msra.mxu0 %v638
        %1079 = vmatpush.bf16.msra.mxu0 %v635
        %1080 = vmatpush.bf16.msra.mxu0 %v632
        %1081 = vmatpush.bf16.msra.mxu0 %v629
        %1082 = vmatpush.bf16.msra.mxu0 %v626
        %1083 = vmatpush.bf16.msra.mxu0 %v623
        %1084 = vmatpush.bf16.msra.mxu0 %v620
        %1085 = vmatpush.bf16.msra.mxu0 %v617
        %1086 = vmatmul.bf16.gmra.mxu0 %v232
        %v1087 = vpop.f32.mrf.mxu0
        %v1088 = vadd.f32 %v1039, %v1087
        %v1089 = vpop.f32.mrf.mxu0
        %v1090 = vadd.f32 %v1041, %v1089
        %1091 = vmatmul.bf16.gmra.mxu0 %v235
        %v1092 = vpop.f32.mrf.mxu0
        %v1093 = vadd.f32 %v1044, %v1092
        %v1094 = vpop.f32.mrf.mxu0
        %v1095 = vadd.f32 %v1046, %v1094
        %1096 = vmatmul.bf16.gmra.mxu0 %v238
        %v1097 = vpop.f32.mrf.mxu0
        %v1098 = vadd.f32 %v1049, %v1097
        %v1099 = vpop.f32.mrf.mxu0
        %v1100 = vadd.f32 %v1051, %v1099
        %1101 = vmatmul.bf16.gmra.mxu0 %v241
        %v1102 = vpop.f32.mrf.mxu0
        %v1103 = vadd.f32 %v1054, %v1102
        %v1104 = vpop.f32.mrf.mxu0
        %v1105 = vadd.f32 %v1056, %v1104
        %1106 = vmatmul.bf16.gmra.mxu0 %v244
        %v1107 = vpop.f32.mrf.mxu0
        %v1108 = vadd.f32 %v1059, %v1107
        %v1109 = vpop.f32.mrf.mxu0
        %v1110 = vadd.f32 %v1061, %v1109
        %1111 = vmatmul.bf16.gmra.mxu0 %v247
        %v1112 = vpop.f32.mrf.mxu0
        %v1113 = vadd.f32 %v1064, %v1112
        %v1114 = vpop.f32.mrf.mxu0
        %v1115 = vadd.f32 %v1066, %v1114
        %1116 = vmatmul.bf16.gmra.mxu0 %v250
        %v1117 = vpop.f32.mrf.mxu0
        %v1118 = vadd.f32 %v1069, %v1117
        %v1119 = vpop.f32.mrf.mxu0
        %v1120 = vadd.f32 %v1071, %v1119
        %1121 = vmatmul.bf16.gmra.mxu0 %v253
        %v1122 = vpop.f32.mrf.mxu0
        %v1123 = vadd.f32 %v1074, %v1122
        %v1124 = vpop.f32.mrf.mxu0
        %v1125 = vadd.f32 %v1076, %v1124
        %1126 = vdwg.mxu0
        %1127 = vmatpush.bf16.msra.mxu0 %v662
        %1128 = vmatpush.bf16.msra.mxu0 %v659
        %1129 = vmatpush.bf16.msra.mxu0 %v656
        %1130 = vmatpush.bf16.msra.mxu0 %v653
        %1131 = vmatpush.bf16.msra.mxu0 %v650
        %1132 = vmatpush.bf16.msra.mxu0 %v647
        %1133 = vmatpush.bf16.msra.mxu0 %v644
        %1134 = vmatpush.bf16.msra.mxu0 %v641
        %1135 = vmatmul.bf16.gmra.mxu0 %v233
        %v1136 = vpop.f32.mrf.mxu0
        %v1137 = vadd.f32 %v1088, %v1136
        %v1138 = vpop.f32.mrf.mxu0
        %v1139 = vadd.f32 %v1090, %v1138
        %1140 = vmatmul.bf16.gmra.mxu0 %v236
        %v1141 = vpop.f32.mrf.mxu0
        %v1142 = vadd.f32 %v1093, %v1141
        %v1143 = vpop.f32.mrf.mxu0
        %v1144 = vadd.f32 %v1095, %v1143
        %1145 = vmatmul.bf16.gmra.mxu0 %v239
        %v1146 = vpop.f32.mrf.mxu0
        %v1147 = vadd.f32 %v1098, %v1146
        %v1148 = vpop.f32.mrf.mxu0
        %v1149 = vadd.f32 %v1100, %v1148
        %1150 = vmatmul.bf16.gmra.mxu0 %v242
        %v1151 = vpop.f32.mrf.mxu0
        %v1152 = vadd.f32 %v1103, %v1151
        %v1153 = vpop.f32.mrf.mxu0
        %v1154 = vadd.f32 %v1105, %v1153
        %1155 = vmatmul.bf16.gmra.mxu0 %v245
        %v1156 = vpop.f32.mrf.mxu0
        %v1157 = vadd.f32 %v1108, %v1156
        %v1158 = vpop.f32.mrf.mxu0
        %v1159 = vadd.f32 %v1110, %v1158
        %1160 = vmatmul.bf16.gmra.mxu0 %v248
        %v1161 = vpop.f32.mrf.mxu0
        %v1162 = vadd.f32 %v1113, %v1161
        %v1163 = vpop.f32.mrf.mxu0
        %v1164 = vadd.f32 %v1115, %v1163
        %1165 = vmatmul.bf16.gmra.mxu0 %v251
        %v1166 = vpop.f32.mrf.mxu0
        %v1167 = vadd.f32 %v1118, %v1166
        %v1168 = vpop.f32.mrf.mxu0
        %v1169 = vadd.f32 %v1120, %v1168
        %1170 = vmatmul.bf16.gmra.mxu0 %v254
        %v1171 = vpop.f32.mrf.mxu0
        %v1172 = vadd.f32 %v1123, %v1171
        %v1173 = vpop.f32.mrf.mxu0
        %v1174 = vadd.f32 %v1125, %v1173
        %1175 = vdwg.mxu0
        %v1176 = vpack.c.bf16 %v990, %v843
        %v1177 = vpack.c.bf16 %v1137, %v1137
        %v1178 = vpack.c.bf16 %v992, %v845
        %v1179 = vpack.c.bf16 %v1139, %v1139
        %v1180 = vpack.c.bf16 %v995, %v848
        %v1181 = vpack.c.bf16 %v1142, %v1142
        %v1182 = vpack.c.bf16 %v997, %v850
        %v1183 = vpack.c.bf16 %v1144, %v1144
        %v1184 = vpack.c.bf16 %v1000, %v853
        %v1185 = vpack.c.bf16 %v1147, %v1147
        %v1186 = vpack.c.bf16 %v1002, %v855
        %v1187 = vpack.c.bf16 %v1149, %v1149
        %v1188 = vpack.c.bf16 %v1005, %v858
        %v1189 = vpack.c.bf16 %v1152, %v1152
        %v1190 = vpack.c.bf16 %v1007, %v860
        %v1191 = vpack.c.bf16 %v1154, %v1154
        %v1192 = vpack.c.bf16 %v1010, %v863
        %v1193 = vpack.c.bf16 %v1157, %v1157
        %v1194 = vpack.c.bf16 %v1012, %v865
        %v1195 = vpack.c.bf16 %v1159, %v1159
        %v1196 = vpack.c.bf16 %v1015, %v868
        %v1197 = vpack.c.bf16 %v1162, %v1162
        %v1198 = vpack.c.bf16 %v1017, %v870
        %v1199 = vpack.c.bf16 %v1164, %v1164
        %v1200 = vpack.c.bf16 %v1020, %v873
        %v1201 = vpack.c.bf16 %v1167, %v1167
        %v1202 = vpack.c.bf16 %v1022, %v875
        %v1203 = vpack.c.bf16 %v1169, %v1169
        %v1204 = vpack.c.bf16 %v1025, %v878
        %v1205 = vpack.c.bf16 %v1172, %v1172
        %v1206 = vpack.c.bf16 %v1027, %v880
        %v1207 = vpack.c.bf16 %v1174, %v1174
        %1208 = vst [vmem:[#allocation2] sm:$0xff] %v1176
        %1209 = vst [vmem:[#allocation2 + $0x8] sm:$0xf] %v1177
        %1210 = vst [vmem:[#allocation2 + $0xc] sm:$0xff] %v1178
        %1211 = vst [vmem:[#allocation2 + $0x14] sm:$0xf] %v1179
        %1212 = vst [vmem:[#allocation2 + $0x18] sm:$0xff] %v1180
        %1213 = vst [vmem:[#allocation2 + $0x20] sm:$0xf] %v1181
        %1214 = vst [vmem:[#allocation2 + $0x24] sm:$0xff] %v1182
        %1215 = vst [vmem:[#allocation2 + $0x2c] sm:$0xf] %v1183
        %1216 = vst [vmem:[#allocation2 + $0x30] sm:$0xff] %v1184
        %1217 = vst [vmem:[#allocation2 + $0x38] sm:$0xf] %v1185
        %1218 = vst [vmem:[#allocation2 + $0x3c] sm:$0xff] %v1186
        %1219 = vst [vmem:[#allocation2 + $0x44] sm:$0xf] %v1187
        %1220 = vst [vmem:[#allocation2 + $0x48] sm:$0xff] %v1188
        %1221 = vst [vmem:[#allocation2 + $0x50] sm:$0xf] %v1189
        %1222 = vst [vmem:[#allocation2 + $0x54] sm:$0xff] %v1190
        %1223 = vst [vmem:[#allocation2 + $0x5c] sm:$0xf] %v1191
        %1224 = vst [vmem:[#allocation2 + $0x60] sm:$0xff] %v1192
        %1225 = vst [vmem:[#allocation2 + $0x68] sm:$0xf] %v1193
        %1226 = vst [vmem:[#allocation2 + $0x6c] sm:$0xff] %v1194
        %1227 = vst [vmem:[#allocation2 + $0x74] sm:$0xf] %v1195
        %1228 = vst [vmem:[#allocation2 + $0x78] sm:$0xff] %v1196
        %1229 = vst [vmem:[#allocation2 + $0x80] sm:$0xf] %v1197
        %1230 = vst [vmem:[#allocation2 + $0x84] sm:$0xff] %v1198
        %1231 = vst [vmem:[#allocation2 + $0x8c] sm:$0xf] %v1199
        %1232 = vst [vmem:[#allocation2 + $0x90] sm:$0xff] %v1200
        %1233 = vst [vmem:[#allocation2 + $0x98] sm:$0xf] %v1201
        %1234 = vst [vmem:[#allocation2 + $0x9c] sm:$0xff] %v1202
        %1235 = vst [vmem:[#allocation2 + $0xa4] sm:$0xf] %v1203
        %1236 = vst [vmem:[#allocation2 + $0xa8] sm:$0xff] %v1204
        %1237 = vst [vmem:[#allocation2 + $0xb0] sm:$0xf] %v1205
        %1238 = vst [vmem:[#allocation2 + $0xb4] sm:$0xff] %v1206
        %1239 = vst [vmem:[#allocation2 + $0xbc] sm:$0xf] %v1207
        %v1240 = vld [vmem:[#allocation2] sm:$0xf]
        %v1241 = vld [vmem:[#allocation2 + $0xc] sm:$0xf]
        %v1242 = vld [vmem:[#allocation2 + $0x18] sm:$0xf]
        %v1243 = vld [vmem:[#allocation2 + $0x24] sm:$0xf]
        %v1244 = vld [vmem:[#allocation2 + $0x30] sm:$0xf]
        %v1245 = vld [vmem:[#allocation2 + $0x3c] sm:$0xf]
        %v1246 = vld [vmem:[#allocation2 + $0x48] sm:$0xf]
        %v1247 = vld [vmem:[#allocation2 + $0x54] sm:$0xf]
        %v1248 = vld [vmem:[#allocation2 + $0x60] sm:$0xf]
        %v1249 = vld [vmem:[#allocation2 + $0x6c] sm:$0xf]
        %v1250 = vld [vmem:[#allocation2 + $0x78] sm:$0xf]
        %v1251 = vld [vmem:[#allocation2 + $0x84] sm:$0xf]
        %v1252 = vld [vmem:[#allocation2 + $0x90] sm:$0xf]
        %v1253 = vld [vmem:[#allocation2 + $0x9c] sm:$0xf]
        %v1254 = vld [vmem:[#allocation2 + $0xa8] sm:$0xf]
        %v1255 = vld [vmem:[#allocation2 + $0xb4] sm:$0xf]
        %v1256 = vld [vmem:[#allocation2 + $0x4] sm:$0xf]
        %v1257 = vld [vmem:[#allocation2 + $0x10] sm:$0xf]
        %v1258 = vld [vmem:[#allocation2 + $0x1c] sm:$0xf]
        %v1259 = vld [vmem:[#allocation2 + $0x28] sm:$0xf]
        %v1260 = vld [vmem:[#allocation2 + $0x34] sm:$0xf]
        %v1261 = vld [vmem:[#allocation2 + $0x40] sm:$0xf]
        %v1262 = vld [vmem:[#allocation2 + $0x4c] sm:$0xf]
        %v1263 = vld [vmem:[#allocation2 + $0x58] sm:$0xf]
        %v1264 = vld [vmem:[#allocation2 + $0x64] sm:$0xf]
        %v1265 = vld [vmem:[#allocation2 + $0x70] sm:$0xf]
        %v1266 = vld [vmem:[#allocation2 + $0x7c] sm:$0xf]
        %v1267 = vld [vmem:[#allocation2 + $0x88] sm:$0xf]
        %v1268 = vld [vmem:[#allocation2 + $0x94] sm:$0xf]
        %v1269 = vld [vmem:[#allocation2 + $0xa0] sm:$0xf]
        %v1270 = vld [vmem:[#allocation2 + $0xac] sm:$0xf]
        %v1271 = vld [vmem:[#allocation2 + $0xb8] sm:$0xf]
        %v1288 = vunpack.c.l.b16 %v1256
        %v1289 = vunpack.c.l.b16 %v1257
        %v1290 = vunpack.c.l.b16 %v1258
        %v1291 = vunpack.c.l.b16 %v1259
        %v1292 = vunpack.c.l.b16 %v1260
        %v1293 = vunpack.c.l.b16 %v1261
        %v1294 = vunpack.c.l.b16 %v1262
        %v1295 = vunpack.c.l.b16 %v1263
        %v1296 = vunpack.c.l.b16 %v1264
        %v1297 = vunpack.c.l.b16 %v1265
        %v1298 = vunpack.c.l.b16 %v1266
        %v1299 = vunpack.c.l.b16 %v1267
        %v1300 = vunpack.c.l.b16 %v1268
        %v1301 = vunpack.c.l.b16 %v1269
        %v1302 = vunpack.c.l.b16 %v1270
        %v1303 = vunpack.c.l.b16 %v1271
        %v1304 = vpack.c.b16 %v1289, %v1288
        %v1305 = vpack.c.b16 %v1291, %v1290
        %v1306 = vpack.c.b16 %v1293, %v1292
        %v1307 = vpack.c.b16 %v1295, %v1294
        %v1308 = vpack.c.b16 %v1297, %v1296
        %v1309 = vpack.c.b16 %v1299, %v1298
        %v1310 = vpack.c.b16 %v1301, %v1300
        %v1311 = vpack.c.b16 %v1303, %v1302
        %v1336 = vunpack.c.l.b16 %v1240
        %v1337 = vunpack.c.l.b16 %v1241
        %v1338 = vunpack.c.l.b16 %v1242
        %v1339 = vunpack.c.l.b16 %v1243
        %v1340 = vunpack.c.l.b16 %v1244
        %v1341 = vunpack.c.l.b16 %v1245
        %v1342 = vunpack.c.l.b16 %v1246
        %v1343 = vunpack.c.l.b16 %v1247
        %v1344 = vunpack.c.l.b16 %v1248
        %v1345 = vunpack.c.l.b16 %v1249
        %v1346 = vunpack.c.l.b16 %v1250
        %v1347 = vunpack.c.l.b16 %v1251
        %v1348 = vunpack.c.l.b16 %v1252
        %v1349 = vunpack.c.l.b16 %v1253
        %v1350 = vunpack.c.l.b16 %v1254
        %v1351 = vunpack.c.l.b16 %v1255
        %v1352 = vpack.c.b16 %v1337, %v1336
        %v1353 = vpack.c.b16 %v1339, %v1338
        %v1354 = vpack.c.b16 %v1341, %v1340
        %v1355 = vpack.c.b16 %v1343, %v1342
        %v1356 = vpack.c.b16 %v1345, %v1344
        %v1357 = vpack.c.b16 %v1347, %v1346
        %v1358 = vpack.c.b16 %v1349, %v1348
        %v1359 = vpack.c.b16 %v1351, %v1350
        %1368 = vmatpush.bf16.xpose.msra.mxu0 %v1359
        %1369 = vmatpush.bf16.xpose.msra.mxu0 %v1358
        %1370 = vmatpush.bf16.xpose.msra.mxu0 %v1357
        %1371 = vmatpush.bf16.xpose.msra.mxu0 %v1356
        %1372 = vmatpush.bf16.xpose.msra.mxu0 %v1355
        %1373 = vmatpush.bf16.xpose.msra.mxu0 %v1354
        %1374 = vmatpush.bf16.xpose.msra.mxu0 %v1353
        %1375 = vmatpush.bf16.xpose.msra.mxu0 %v1352
        %1376 = vmatmul.bf16.gmra.mxu0 %v1304
        %v1377 = vpop.f32.mrf.mxu0
        %v1378 = vadd.f32 0.0, %v1377
        %v1379 = vpop.f32.mrf.mxu0
        %v1380 = vadd.f32 0.0, %v1379
        %1381 = vmatmul.bf16.gmra.mxu0 %v1305
        %v1382 = vpop.f32.mrf.mxu0
        %v1383 = vadd.f32 0.0, %v1382
        %v1384 = vpop.f32.mrf.mxu0
        %v1385 = vadd.f32 0.0, %v1384
        %1386 = vmatmul.bf16.gmra.mxu0 %v1306
        %v1387 = vpop.f32.mrf.mxu0
        %v1388 = vadd.f32 0.0, %v1387
        %v1389 = vpop.f32.mrf.mxu0
        %v1390 = vadd.f32 0.0, %v1389
        %1391 = vmatmul.bf16.gmra.mxu0 %v1307
        %v1392 = vpop.f32.mrf.mxu0
        %v1393 = vadd.f32 0.0, %v1392
        %v1394 = vpop.f32.mrf.mxu0
        %v1395 = vadd.f32 0.0, %v1394
        %1396 = vmatmul.bf16.gmra.mxu0 %v1308
        %v1397 = vpop.f32.mrf.mxu0
        %v1398 = vadd.f32 0.0, %v1397
        %v1399 = vpop.f32.mrf.mxu0
        %v1400 = vadd.f32 0.0, %v1399
        %1401 = vmatmul.bf16.gmra.mxu0 %v1309
        %v1402 = vpop.f32.mrf.mxu0
        %v1403 = vadd.f32 0.0, %v1402
        %v1404 = vpop.f32.mrf.mxu0
        %v1405 = vadd.f32 0.0, %v1404
        %1406 = vmatmul.bf16.gmra.mxu0 %v1310
        %v1407 = vpop.f32.mrf.mxu0
        %v1408 = vadd.f32 0.0, %v1407
        %v1409 = vpop.f32.mrf.mxu0
        %v1410 = vadd.f32 0.0, %v1409
        %1411 = vmatmul.bf16.gmra.mxu0 %v1311
        %v1412 = vpop.f32.mrf.mxu0
        %v1413 = vadd.f32 0.0, %v1412
        %v1414 = vpop.f32.mrf.mxu0
        %v1415 = vadd.f32 0.0, %v1414
        %1416 = vdwg.mxu0
        %v1417 = vlaneseq
        %v1418 = vshrl.u32 %v1417, 7
        %v1419 = vadd.s32 %v1418, 8
        %v1420 = vadd.s32 %v1418, 16
        %v1421 = vadd.s32 %v1418, 24
        %v1422 = vadd.s32 %v1418, 32
        %v1423 = vadd.s32 %v1418, 40
        %v1424 = vadd.s32 %v1418, 48
        %v1425 = vadd.s32 %v1418, 56
        %v1426 = vadd.s32 %v1418, 64
        %v1427 = vadd.s32 %v1418, 72
        %v1428 = vadd.s32 %v1418, 80
        %v1429 = vadd.s32 %v1418, 88
        %v1430 = vadd.s32 %v1418, 96
        %v1431 = vadd.s32 %v1418, 104
        %v1432 = vadd.s32 %v1418, 112
        %v1433 = vadd.s32 %v1418, 120
        %v1434 = vlaneseq
        %v1435 = vand.u32 %v1434, 127
        %vm1436 = vcmp.le.s32.totalorder %v1435, %v1418
        %vm1437 = vcmp.le.s32.totalorder %v1435, %v1419
        %vm1438 = vcmp.le.s32.totalorder %v1435, %v1420
        %vm1439 = vcmp.le.s32.totalorder %v1435, %v1421
        %vm1440 = vcmp.le.s32.totalorder %v1435, %v1422
        %vm1441 = vcmp.le.s32.totalorder %v1435, %v1423
        %vm1442 = vcmp.le.s32.totalorder %v1435, %v1424
        %vm1443 = vcmp.le.s32.totalorder %v1435, %v1425
        %vm1444 = vcmp.le.s32.totalorder %v1435, %v1426
        %vm1445 = vcmp.le.s32.totalorder %v1435, %v1427
        %vm1446 = vcmp.le.s32.totalorder %v1435, %v1428
        %vm1447 = vcmp.le.s32.totalorder %v1435, %v1429
        %vm1448 = vcmp.le.s32.totalorder %v1435, %v1430
        %vm1449 = vcmp.le.s32.totalorder %v1435, %v1431
        %vm1450 = vcmp.le.s32.totalorder %v1435, %v1432
        %vm1451 = vcmp.le.s32.totalorder %v1435, %v1433
        %v1452 = vsel %vm1436, %v1378, -inf
        %v1453 = vsel %vm1437, %v1380, -inf
        %v1454 = vsel %vm1438, %v1383, -inf
        %v1455 = vsel %vm1439, %v1385, -inf
        %v1456 = vsel %vm1440, %v1388, -inf
        %v1457 = vsel %vm1441, %v1390, -inf
        %v1458 = vsel %vm1442, %v1393, -inf
        %v1459 = vsel %vm1443, %v1395, -inf
        %v1460 = vsel %vm1444, %v1398, -inf
        %v1461 = vsel %vm1445, %v1400, -inf
        %v1462 = vsel %vm1446, %v1403, -inf
        %v1463 = vsel %vm1447, %v1405, -inf
        %v1464 = vsel %vm1448, %v1408, -inf
        %v1465 = vsel %vm1449, %v1410, -inf
        %v1466 = vsel %vm1450, %v1413, -inf
        %v1467 = vsel %vm1451, %v1415, -inf
        %1468 = vmax.xlane.f32.xlu0 %v1452
        %v1469 = vpop.xlane.xlu0 %1468
        %1470 = vmax.xlane.f32.xlu0 %v1453
        %v1471 = vpop.xlane.xlu0 %1470
        %1472 = vmax.xlane.f32.xlu0 %v1454
        %v1473 = vpop.xlane.xlu0 %1472
        %1474 = vmax.xlane.f32.xlu0 %v1455
        %v1475 = vpop.xlane.xlu0 %1474
        %1476 = vmax.xlane.f32.xlu0 %v1456
        %v1477 = vpop.xlane.xlu0 %1476
        %1478 = vmax.xlane.f32.xlu0 %v1457
        %v1479 = vpop.xlane.xlu0 %1478
        %1480 = vmax.xlane.f32.xlu0 %v1458
        %v1481 = vpop.xlane.xlu0 %1480
        %1482 = vmax.xlane.f32.xlu0 %v1459
        %v1483 = vpop.xlane.xlu0 %1482
        %1484 = vmax.xlane.f32.xlu0 %v1460
        %v1485 = vpop.xlane.xlu0 %1484
        %1486 = vmax.xlane.f32.xlu0 %v1461
        %v1487 = vpop.xlane.xlu0 %1486
        %1488 = vmax.xlane.f32.xlu0 %v1462
        %v1489 = vpop.xlane.xlu0 %1488
        %1490 = vmax.xlane.f32.xlu0 %v1463
        %v1491 = vpop.xlane.xlu0 %1490
        %1492 = vmax.xlane.f32.xlu0 %v1464
        %v1493 = vpop.xlane.xlu0 %1492
        %1494 = vmax.xlane.f32.xlu0 %v1465
        %v1495 = vpop.xlane.xlu0 %1494
        %1496 = vmax.xlane.f32.xlu0 %v1466
        %v1497 = vpop.xlane.xlu0 %1496
        %1498 = vmax.xlane.f32.xlu0 %v1467
        %v1499 = vpop.xlane.xlu0 %1498
        %v1500 = vsub.f32 %v1452, %v1469
        %v1501 = vsub.f32 %v1453, %v1471
        %v1502 = vsub.f32 %v1454, %v1473
        %v1503 = vsub.f32 %v1455, %v1475
        %v1504 = vsub.f32 %v1456, %v1477
        %v1505 = vsub.f32 %v1457, %v1479
        %v1506 = vsub.f32 %v1458, %v1481
        %v1507 = vsub.f32 %v1459, %v1483
        %v1508 = vsub.f32 %v1460, %v1485
        %v1509 = vsub.f32 %v1461, %v1487
        %v1510 = vsub.f32 %v1462, %v1489
        %v1511 = vsub.f32 %v1463, %v1491
        %v1512 = vsub.f32 %v1464, %v1493
        %v1513 = vsub.f32 %v1465, %v1495
        %v1514 = vsub.f32 %v1466, %v1497
        %v1515 = vsub.f32 %v1467, %v1499
        %v1516 = vmul.f32 %v1500, 1.442695
        %v1517 = vpow.pop %v1516
        %v1518 = vmul.f32 %v1501, 1.442695
        %v1519 = vpow.pop %v1518
        %v1520 = vmul.f32 %v1502, 1.442695
        %v1521 = vpow.pop %v1520
        %v1522 = vmul.f32 %v1503, 1.442695
        %v1523 = vpow.pop %v1522
        %v1524 = vmul.f32 %v1504, 1.442695
        %v1525 = vpow.pop %v1524
        %v1526 = vmul.f32 %v1505, 1.442695
        %v1527 = vpow.pop %v1526
        %v1528 = vmul.f32 %v1506, 1.442695
        %v1529 = vpow.pop %v1528
        %v1530 = vmul.f32 %v1507, 1.442695
        %v1531 = vpow.pop %v1530
        %v1532 = vmul.f32 %v1508, 1.442695
        %v1533 = vpow.pop %v1532
        %v1534 = vmul.f32 %v1509, 1.442695
        %v1535 = vpow.pop %v1534
        %v1536 = vmul.f32 %v1510, 1.442695
        %v1537 = vpow.pop %v1536
        %v1538 = vmul.f32 %v1511, 1.442695
        %v1539 = vpow.pop %v1538
        %v1540 = vmul.f32 %v1512, 1.442695
        %v1541 = vpow.pop %v1540
        %v1542 = vmul.f32 %v1513, 1.442695
        %v1543 = vpow.pop %v1542
        %v1544 = vmul.f32 %v1514, 1.442695
        %v1545 = vpow.pop %v1544
        %v1546 = vmul.f32 %v1515, 1.442695
        %v1547 = vpow.pop %v1546
        %1548 = vadd.xlane.f32.xlu0 %v1517
        %v1549 = vpop.xlane.xlu0 %1548
        %1550 = vadd.xlane.f32.xlu0 %v1519
        %v1551 = vpop.xlane.xlu0 %1550
        %1552 = vadd.xlane.f32.xlu0 %v1521
        %v1553 = vpop.xlane.xlu0 %1552
        %1554 = vadd.xlane.f32.xlu0 %v1523
        %v1555 = vpop.xlane.xlu0 %1554
        %1556 = vadd.xlane.f32.xlu0 %v1525
        %v1557 = vpop.xlane.xlu0 %1556
        %1558 = vadd.xlane.f32.xlu0 %v1527
        %v1559 = vpop.xlane.xlu0 %1558
        %1560 = vadd.xlane.f32.xlu0 %v1529
        %v1561 = vpop.xlane.xlu0 %1560
        %1562 = vadd.xlane.f32.xlu0 %v1531
        %v1563 = vpop.xlane.xlu0 %1562
        %1564 = vadd.xlane.f32.xlu0 %v1533
        %v1565 = vpop.xlane.xlu0 %1564
        %1566 = vadd.xlane.f32.xlu0 %v1535
        %v1567 = vpop.xlane.xlu0 %1566
        %1568 = vadd.xlane.f32.xlu0 %v1537
        %v1569 = vpop.xlane.xlu0 %1568
        %1570 = vadd.xlane.f32.xlu0 %v1539
        %v1571 = vpop.xlane.xlu0 %1570
        %1572 = vadd.xlane.f32.xlu0 %v1541
        %v1573 = vpop.xlane.xlu0 %1572
        %1574 = vadd.xlane.f32.xlu0 %v1543
        %v1575 = vpop.xlane.xlu0 %1574
        %1576 = vadd.xlane.f32.xlu0 %v1545
        %v1577 = vpop.xlane.xlu0 %1576
        %1578 = vadd.xlane.f32.xlu0 %v1547
        %v1579 = vpop.xlane.xlu0 %1578
        %v1580 = vrcp.pop %v1549
        %v1581 = vrcp.pop %v1551
        %v1582 = vrcp.pop %v1553
        %v1583 = vrcp.pop %v1555
        %v1584 = vrcp.pop %v1557
        %v1585 = vrcp.pop %v1559
        %v1586 = vrcp.pop %v1561
        %v1587 = vrcp.pop %v1563
        %v1588 = vrcp.pop %v1565
        %v1589 = vrcp.pop %v1567
        %v1590 = vrcp.pop %v1569
        %v1591 = vrcp.pop %v1571
        %v1592 = vrcp.pop %v1573
        %v1593 = vrcp.pop %v1575
        %v1594 = vrcp.pop %v1577
        %v1595 = vrcp.pop %v1579
        %v1596 = vmul.f32 %v1517, %v1580
        %v1597 = vmul.f32 %v1519, %v1581
        %v1598 = vmul.f32 %v1521, %v1582
        %v1599 = vmul.f32 %v1523, %v1583
        %v1600 = vmul.f32 %v1525, %v1584
        %v1601 = vmul.f32 %v1527, %v1585
        %v1602 = vmul.f32 %v1529, %v1586
        %v1603 = vmul.f32 %v1531, %v1587
        %v1604 = vmul.f32 %v1533, %v1588
        %v1605 = vmul.f32 %v1535, %v1589
        %v1606 = vmul.f32 %v1537, %v1590
        %v1607 = vmul.f32 %v1539, %v1591
        %v1608 = vmul.f32 %v1541, %v1592
        %v1609 = vmul.f32 %v1543, %v1593
        %v1610 = vmul.f32 %v1545, %v1594
        %v1611 = vmul.f32 %v1547, %v1595
        %v1612 = vld [vmem:[#allocation2 + $0x8] sm:$0xf]
        %v1613 = vld [vmem:[#allocation2 + $0x14] sm:$0xf]
        %v1614 = vld [vmem:[#allocation2 + $0x20] sm:$0xf]
        %v1615 = vld [vmem:[#allocation2 + $0x2c] sm:$0xf]
        %v1616 = vld [vmem:[#allocation2 + $0x38] sm:$0xf]
        %v1617 = vld [vmem:[#allocation2 + $0x44] sm:$0xf]
        %v1618 = vld [vmem:[#allocation2 + $0x50] sm:$0xf]
        %v1619 = vld [vmem:[#allocation2 + $0x5c] sm:$0xf]
        %v1620 = vld [vmem:[#allocation2 + $0x68] sm:$0xf]
        %v1621 = vld [vmem:[#allocation2 + $0x74] sm:$0xf]
        %v1622 = vld [vmem:[#allocation2 + $0x80] sm:$0xf]
        %v1623 = vld [vmem:[#allocation2 + $0x8c] sm:$0xf]
        %v1624 = vld [vmem:[#allocation2 + $0x98] sm:$0xf]
        %v1625 = vld [vmem:[#allocation2 + $0xa4] sm:$0xf]
        %v1626 = vld [vmem:[#allocation2 + $0xb0] sm:$0xf]
        %v1627 = vld [vmem:[#allocation2 + $0xbc] sm:$0xf]
        %v1628 = vpack.c.bf16 %v1597, %v1596
        %v1629 = vpack.c.bf16 %v1599, %v1598
        %v1630 = vpack.c.bf16 %v1601, %v1600
        %v1631 = vpack.c.bf16 %v1603, %v1602
        %v1632 = vpack.c.bf16 %v1605, %v1604
        %v1633 = vpack.c.bf16 %v1607, %v1606
        %v1634 = vpack.c.bf16 %v1609, %v1608
        %v1635 = vpack.c.bf16 %v1611, %v1610
        %v1652 = vunpack.c.l.b16 %v1612
        %v1653 = vunpack.c.l.b16 %v1613
        %v1654 = vunpack.c.l.b16 %v1614
        %v1655 = vunpack.c.l.b16 %v1615
        %v1656 = vunpack.c.l.b16 %v1616
        %v1657 = vunpack.c.l.b16 %v1617
        %v1658 = vunpack.c.l.b16 %v1618
        %v1659 = vunpack.c.l.b16 %v1619
        %v1660 = vunpack.c.l.b16 %v1620
        %v1661 = vunpack.c.l.b16 %v1621
        %v1662 = vunpack.c.l.b16 %v1622
        %v1663 = vunpack.c.l.b16 %v1623
        %v1664 = vunpack.c.l.b16 %v1624
        %v1665 = vunpack.c.l.b16 %v1625
        %v1666 = vunpack.c.l.b16 %v1626
        %v1667 = vunpack.c.l.b16 %v1627
        %v1668 = vpack.c.b16 %v1653, %v1652
        %v1669 = vpack.c.b16 %v1655, %v1654
        %v1670 = vpack.c.b16 %v1657, %v1656
        %v1671 = vpack.c.b16 %v1659, %v1658
        %v1672 = vpack.c.b16 %v1661, %v1660
        %v1673 = vpack.c.b16 %v1663, %v1662
        %v1674 = vpack.c.b16 %v1665, %v1664
        %v1675 = vpack.c.b16 %v1667, %v1666
        %1684 = vmatpush.bf16.msra.mxu0 %v1675
        %1685 = vmatpush.bf16.msra.mxu0 %v1674
        %1686 = vmatpush.bf16.msra.mxu0 %v1673
        %1687 = vmatpush.bf16.msra.mxu0 %v1672
        %1688 = vmatpush.bf16.msra.mxu0 %v1671
        %1689 = vmatpush.bf16.msra.mxu0 %v1670
        %1690 = vmatpush.bf16.msra.mxu0 %v1669
        %1691 = vmatpush.bf16.msra.mxu0 %v1668
        %1692 = vmatmul.bf16.gmra.mxu0 %v1628
        %v1693 = vpop.f32.mrf.mxu0
        %v1694 = vadd.f32 0.0, %v1693
        %v1695 = vpop.f32.mrf.mxu0
        %v1696 = vadd.f32 0.0, %v1695
        %1697 = vmatmul.bf16.gmra.mxu0 %v1629
        %v1698 = vpop.f32.mrf.mxu0
        %v1699 = vadd.f32 0.0, %v1698
        %v1700 = vpop.f32.mrf.mxu0
        %v1701 = vadd.f32 0.0, %v1700
        %1702 = vmatmul.bf16.gmra.mxu0 %v1630
        %v1703 = vpop.f32.mrf.mxu0
        %v1704 = vadd.f32 0.0, %v1703
        %v1705 = vpop.f32.mrf.mxu0
        %v1706 = vadd.f32 0.0, %v1705
        %1707 = vmatmul.bf16.gmra.mxu0 %v1631
        %v1708 = vpop.f32.mrf.mxu0
        %v1709 = vadd.f32 0.0, %v1708
        %v1710 = vpop.f32.mrf.mxu0
        %v1711 = vadd.f32 0.0, %v1710
        %1712 = vmatmul.bf16.gmra.mxu0 %v1632
        %v1713 = vpop.f32.mrf.mxu0
        %v1714 = vadd.f32 0.0, %v1713
        %v1715 = vpop.f32.mrf.mxu0
        %v1716 = vadd.f32 0.0, %v1715
        %1717 = vmatmul.bf16.gmra.mxu0 %v1633
        %v1718 = vpop.f32.mrf.mxu0
        %v1719 = vadd.f32 0.0, %v1718
        %v1720 = vpop.f32.mrf.mxu0
        %v1721 = vadd.f32 0.0, %v1720
        %1722 = vmatmul.bf16.gmra.mxu0 %v1634
        %v1723 = vpop.f32.mrf.mxu0
        %v1724 = vadd.f32 0.0, %v1723
        %v1725 = vpop.f32.mrf.mxu0
        %v1726 = vadd.f32 0.0, %v1725
        %1727 = vmatmul.bf16.gmra.mxu0 %v1635
        %v1728 = vpop.f32.mrf.mxu0
        %v1729 = vadd.f32 0.0, %v1728
        %v1730 = vpop.f32.mrf.mxu0
        %v1731 = vadd.f32 0.0, %v1730
        %1732 = vdwg.mxu0
        %vm1733 = vcmask 523264
        %1734 = vst.msk [vmem:[%s182] sm:$0xff] %vm1733, %v1694
        %1735 = vst.msk [vmem:[%s182 + $0x8] sm:$0xff] %vm1733, %v1696
        %1736 = vst.msk [vmem:[%s182 + $0x10] sm:$0xff] %vm1733, %v1699
        %1737 = vst.msk [vmem:[%s182 + $0x18] sm:$0xff] %vm1733, %v1701
        %1738 = vst.msk [vmem:[%s182 + $0x20] sm:$0xff] %vm1733, %v1704
        %1739 = vst.msk [vmem:[%s182 + $0x28] sm:$0xff] %vm1733, %v1706
        %1740 = vst.msk [vmem:[%s182 + $0x30] sm:$0xff] %vm1733, %v1709
        %1741 = vst.msk [vmem:[%s182 + $0x38] sm:$0xff] %vm1733, %v1711
        %1742 = vst.msk [vmem:[%s182 + $0x40] sm:$0xff] %vm1733, %v1714
        %1743 = vst.msk [vmem:[%s182 + $0x48] sm:$0xff] %vm1733, %v1716
        %1744 = vst.msk [vmem:[%s182 + $0x50] sm:$0xff] %vm1733, %v1719
        %1745 = vst.msk [vmem:[%s182 + $0x58] sm:$0xff] %vm1733, %v1721
        %1746 = vst.msk [vmem:[%s182 + $0x60] sm:$0xff] %vm1733, %v1724
        %1747 = vst.msk [vmem:[%s182 + $0x68] sm:$0xff] %vm1733, %v1726
        %1748 = vst.msk [vmem:[%s182 + $0x70] sm:$0xff] %vm1733, %v1729
        %1749 = vst.msk [vmem:[%s182 + $0x78] sm:$0xff] %vm1733, %v1731
        %p1750 = scmp.lt.s32.totalorder %s17, 1
        %s1751 = scalar_select %p1750, %s17, 1
        %s1752 = smul.addr %s1751, 16
        %s1753 = smul.addr %s1752, 8
        %s1754 = scalar_lea.vmem %s2, %s1753
        // Predicated region
        $region37: #{head_forward.1} parent=27 // pred_check
          %p1755 = pneg %p82
        $region38: #{head_forward.1} parent=27 // pred_check_branch
          %1757 = sbr.rel (%p1755) target = $region40
        $region39: #{head_forward.1} parent=27 // pred_region
          _
        $region40: #{head_forward.1} parent=27 // pred_fallthru
          _
      $region28: #{head_forward.1} parent=5 // pred_fallthru
        _
      %p1758 = scmp.le.s32.totalorder 2, %s12
      // Predicated region
      $region41: #{head_forward.1} parent=5 // pred_check
        %p1759 = pneg %p1758
      $region42: #{head_forward.1} parent=5 // pred_check_branch
        %1761 = sbr.rel (%p1759) target = $region44
      $region43: #{head_forward.1} parent=5 // pred_region
        %s1762 = ssub.s32 %s12, 2
        // Predicated region
        $region45: #{head_forward.1} parent=43 // pred_check
          %p1763 = pneg %p88
        $region46: #{head_forward.1} parent=43 // pred_check_branch
          %1765 = sbr.rel (%p1763) target = $region48
        $region47: #{head_forward.1} parent=43 // pred_region
          %p1766 = scmp.lt.s32.totalorder %s18, 1
          %s1767 = scalar_select %p1766, %s18, 1
          %s1768 = smul.addr %s1767, 16
          %s1769 = smul.addr %s1768, 8
          %s1770 = scalar_lea.vmem %s2, %s1769
        $region48: #{head_forward.1} parent=43 // pred_fallthru
          _
      $region44: #{head_forward.1} parent=5 // pred_fallthru
        _
    $region6: #{head_forward.1} parent=1 // loop_footer
      %s16 = sadd.s32 1, %s12
    $region7: #{head_forward.1} parent=1 // loop_footer_branch
      %11 = sbr.rel target = $region3
    $region8: #{head_forward.1} parent=1 // loop_exit
      _
    %1771 = vsyncpa [#allocation4], 1
    %s1772 = scalar_lea.sflag [#allocation4], 1
    %1773 = vsyncpa %s1772, 1
    %1774 = vsyncpa [#allocation6], 1

</llo_original>
